<compile_context>
chip_gen: v6e
topology: v6e:2x2x1
jax: 0.10.0
libtpu: 0.0.40
codegen_flags: <defaults>
</compile_context>

<pallas_src>
import functools

import jax
import jax.numpy as jnp
from jax.experimental import pallas as pl
from jax.experimental.pallas import tpu as pltpu


def _round_up(x, m):
    return -(-x // m) * m


def _rnn_chunk_kernel(obs_ref, h0_ref, w1_ref, wgx_ref, wgh_ref, w2_ref,
                      b1_ref, bg_ref, b2_ref, out_ref,
                      h_acc, gx_buf, h_buf,
                      *, hidden_dim, n_actions, out_w, t_chunk):
    """One grid step = T_CHUNK timesteps.

    Packed layouts (built in pack_params), gate order r|z|n as in PyTorch:
      w1  [input_dim, H]
      wgx [H, 4H] = [w_ih_r | w_ih_z | w_ih_n |   0   ]
      wgh [H, 4H] = [w_hh_r | w_hh_z |   0    | w_hh_n]
      w2  [H, n_actions]
      b1  [1, H]
      bg  [1, 4H] = [b_ir+b_hr | b_iz+b_hz | b_in | b_hn]
      b2  [1, n_actions]
    so that, with  g = (relu(obs@w1+b1) @ wgx + bg) + h @ wgh :
      r = sigmoid(g[:, 0:H]); z = sigmoid(g[:, H:2H])
      n = tanh(g[:, 2H:3H] + r * g[:, 3H:4H])   # = tanh(i_n + b_in + r*(h_n + b_hn))
      h' = (1-z)*n + z*h
    """
    H = hidden_dim
    A = n_actions
    c = pl.program_id(0)
    B = obs_ref.shape[1]
    in_dim = obs_ref.shape[2]
    tb = t_chunk * B

    @pl.when(c == 0)
    def _():
        h_acc[...] = h0_ref[...].astype(jnp.float32)

    # ---- hoisted, h-independent work: fc1 + x-half of the GRU matmul ------
    obs2 = obs_ref[...].reshape(tb, in_dim)
    x = jnp.dot(obs2, w1_ref[...], preferred_element_type=jnp.float32) + b1_ref[...]
    x = jnp.maximum(x, 0.0)
    gx = jnp.dot(x, wgx_ref[...], preferred_element_type=jnp.float32) + bg_ref[...]
    gx_buf[...] = gx.reshape(t_chunk, B, 4 * H)

    wgh = wgh_ref[...]  # resident weight, read once per chunk

    # ---- serial recurrence: only [B,H]@[H,4H] + gate math per step --------
    @pl.loop(0, t_chunk, unroll=True)
    def _(t):
        h = h_acc[...]
        g = gx_buf[t] + jnp.dot(h, wgh, preferred_element_type=jnp.float32)
        rz = jax.nn.sigmoid(g[:, 0:2 * H])
        r = rz[:, 0:H]
        z = rz[:, H:2 * H]
        n = jnp.tanh(g[:, 2 * H:3 * H] + r * g[:, 3 * H:4 * H])
        h_new = (1.0 - z) * n + z * h
        h_acc[...] = h_new
        h_buf[t] = h_new

    # ---- hoisted fc2: one batched matmul for the whole chunk --------------
    h_all = h_buf[...]                                        # [Tc, B, H]
    q = jnp.dot(h_all.reshape(tb, H), w2_ref[...],
                preferred_element_type=jnp.float32) + b2_ref[...]

    # Lane-dense store: one 128-wide slab [q | h | pad], built once per chunk.
    pad = out_w - (A + H)
    pieces = [q, h_all.reshape(tb, H)]
    if pad > 0:
        pieces.append(jnp.zeros((tb, pad), jnp.float32))
    out = jnp.concatenate(pieces, axis=1).reshape(t_chunk, B, out_w)
    out_ref[...] = out.astype(out_ref.dtype)


def pack_params(params, *, hidden_dim):
    """Pack PyTorch-style params into the fused kernel layout."""
    H = hidden_dim
    f32 = jnp.float32
    w_ih = params["gru_w_ih"].astype(f32)   # [H, 3H], gate order r|z|n
    w_hh = params["gru_w_hh"].astype(f32)   # [H, 3H]
    zeros = jnp.zeros((H, H), f32)
    wgx = jnp.concatenate([w_ih, zeros], axis=1)                                     # [H,4H]
    wgh = jnp.concatenate([w_hh[:, 0:2 * H], zeros, w_hh[:, 2 * H:3 * H]], axis=1)   # [H,4H]

    b_ih = params["gru_b_ih"].astype(f32)   # [1, 3H]
    b_hh = params["gru_b_hh"].astype(f32)   # [1, 3H]
    bg = jnp.concatenate([
        b_ih[:, 0:2 * H] + b_hh[:, 0:2 * H],     # r|z biases summed
        b_ih[:, 2 * H:3 * H],                    # b_in
        b_hh[:, 2 * H:3 * H],                    # b_hn (stays inside r*(...))
    ], axis=1)                                   # [1, 4H]

    return (params["fc1_w"].astype(f32), wgx, wgh, params["fc2_w"].astype(f32),
            params["fc1_b"].astype(f32), bg, params["fc2_b"].astype(f32))


def rnn_forward_sequence(obs_seq, hidden_state, params, *, hidden_dim, n_actions,
                         t_chunk=None):
    """Run T recurrent steps in a single pallas_call (chunked over time).

    obs_seq: [T, B, input_dim]; hidden_state: anything reshapable to [B, H].
    Returns (q_seq [T, B, n_actions], h_seq [T, B, H]).
    """
    T, B, input_dim = obs_seq.shape
    H = hidden_dim
    h0 = hidden_state.reshape(-1, H).astype(jnp.float32)
    w1, wgx, wgh, w2, b1, bg, b2 = pack_params(params, hidden_dim=H)
    out_w = _round_up(n_actions + H, 128)

    if t_chunk is None:
        t_chunk = min(T, 16)
    t_chunk = max(1, min(t_chunk, T))
    T_pad = _round_up(T, t_chunk)
    if T_pad != T:
        obs_seq = jnp.concatenate(
            [obs_seq, jnp.zeros((T_pad - T, B, input_dim), obs_seq.dtype)], axis=0)
    n_chunks = T_pad // t_chunk

    kernel = functools.partial(_rnn_chunk_kernel, hidden_dim=H,
                               n_actions=n_actions, out_w=out_w, t_chunk=t_chunk)

    out = pl.pallas_call(
        kernel,
        out_shape=jax.ShapeDtypeStruct((T_pad, B, out_w), jnp.float32),
        grid=(n_chunks,),
        in_specs=[
            pl.BlockSpec((t_chunk, B, input_dim), lambda c: (c, 0, 0)),  # obs: streamed per chunk
            pl.BlockSpec((B, H), lambda c: (0, 0)),                      # h0: resident
            pl.BlockSpec((input_dim, H), lambda c: (0, 0)),              # w1: resident
            pl.BlockSpec((H, 4 * H), lambda c: (0, 0)),                  # wgx: resident
            pl.BlockSpec((H, 4 * H), lambda c: (0, 0)),                  # wgh: resident
            pl.BlockSpec((H, n_actions), lambda c: (0, 0)),              # w2: resident
            pl.BlockSpec((1, H), lambda c: (0, 0)),                      # b1: resident
            pl.BlockSpec((1, 4 * H), lambda c: (0, 0)),                  # bg: resident
            pl.BlockSpec((1, n_actions), lambda c: (0, 0)),              # b2: resident
        ],
        out_specs=pl.BlockSpec((t_chunk, B, out_w), lambda c: (c, 0, 0)),
        scratch_shapes=[
            pltpu.VMEM((B, H), jnp.float32),               # h carry across chunks
            pltpu.VMEM((t_chunk, B, 4 * H), jnp.float32),  # gx (x-half of gates) per chunk
            pltpu.VMEM((t_chunk, B, H), jnp.float32),      # h_t staging for batched fc2
        ],
        compiler_params=pltpu.CompilerParams(
            dimension_semantics=("arbitrary",)),           # true recurrence over chunks
    )(obs_seq, h0, w1, wgx, wgh, w2, b1, bg, b2)

    q_seq = out[:T, :, 0:n_actions]
    h_seq = out[:T, :, n_actions:n_actions + H]
    return q_seq, h_seq


def rnn_forward(obs, hidden_state, params, *, hidden_dim, n_actions):
    """Single-step forward — exact equivalent of RNN.forward(obs, hidden_state)."""
    q_seq, h_seq = rnn_forward_sequence(obs[None], hidden_state, params,
                                        hidden_dim=hidden_dim, n_actions=n_actions)
    return q_seq[0], h_seq[0]


def init_params(key, input_dim, hidden_dim, n_actions):
    ks = jax.random.split(key, 8)
    s1 = 1.0 / jnp.sqrt(input_dim)
    sh = 1.0 / jnp.sqrt(hidden_dim)
    return {
        "fc1_w": jax.random.uniform(ks[0], (input_dim, hidden_dim), jnp.float32, -s1, s1),
        "fc1_b": jax.random.uniform(ks[1], (1, hidden_dim), jnp.float32, -s1, s1),
        "gru_w_ih": jax.random.uniform(ks[2], (hidden_dim, 3 * hidden_dim), jnp.float32, -sh, sh),
        "gru_b_ih": jax.random.uniform(ks[3], (1, 3 * hidden_dim), jnp.float32, -sh, sh),
        "gru_w_hh": jax.random.uniform(ks[4], (hidden_dim, 3 * hidden_dim), jnp.float32, -sh, sh),
        "gru_b_hh": jax.random.uniform(ks[5], (1, 3 * hidden_dim), jnp.float32, -sh, sh),
        "fc2_w": jax.random.uniform(ks[6], (hidden_dim, n_actions), jnp.float32, -sh, sh),
        "fc2_b": jax.random.uniform(ks[7], (1, n_actions), jnp.float32, -sh, sh),
    }


def reference_step(obs, h, params, *, hidden_dim):
    """Pure-JAX single-step reference mirroring the PyTorch module."""
    H = hidden_dim
    x = jnp.maximum(obs @ params["fc1_w"] + params["fc1_b"], 0.0)
    h = h.reshape(-1, H)
    gi = x @ params["gru_w_ih"] + params["gru_b_ih"]
    gh = h @ params["gru_w_hh"] + params["gru_b_hh"]
    r = jax.nn.sigmoid(gi[:, :H] + gh[:, :H])
    z = jax.nn.sigmoid(gi[:, H:2 * H] + gh[:, H:2 * H])
    n = jnp.tanh(gi[:, 2 * H:] + r * gh[:, 2 * H:])
    h_new = (1.0 - z) * n + z * h
    q = h_new @ params["fc2_w"] + params["fc2_b"]
    return q, h_new


if __name__ == "__main__":
    T = 8            # sequence length (episode steps)
    B = 8            # batch (n_agents * episodes)
    INPUT_DIM = 32   # input_shape
    HIDDEN = 32      # args.rnn_hidden_dim
    N_ACTIONS = 16   # args.n_actions

    key = jax.random.PRNGKey(0)
    k_obs, k_h, k_params = jax.random.split(key, 3)

    obs_seq = jax.random.normal(k_obs, (T, B, INPUT_DIM), jnp.float32)
    h0 = jax.random.normal(k_h, (B, HIDDEN), jnp.float32)
    params = init_params(k_params, INPUT_DIM, HIDDEN, N_ACTIONS)

    # Reference: unrolled pure-JAX single-step forward.
    q_ref_l, h_ref_l = [], []
    h = h0
    for t in range(T):
        q_t, h = reference_step(obs_seq[t], h, params, hidden_dim=HIDDEN)
        q_ref_l.append(q_t)
        h_ref_l.append(h)
    q_ref = jnp.stack(q_ref_l)
    h_ref = jnp.stack(h_ref_l)

    # Whole sequence in one grid step (T <= default chunk).
    q_seq, h_seq = rnn_forward_sequence(obs_seq, h0, params,
                                        hidden_dim=HIDDEN, n_actions=N_ACTIONS)
    jax.block_until_ready((q_seq, h_seq))
    assert jnp.allclose(q_seq, q_ref, atol=1e-4, rtol=1e-4)
    assert jnp.allclose(h_seq, h_ref, atol=1e-4, rtol=1e-4)

    # Multi-chunk path: grid=(2,), hidden state carried across chunks in VMEM.
    q_seq2, h_seq2 = rnn_forward_sequence(obs_seq, h0, params, hidden_dim=HIDDEN,
                                          n_actions=N_ACTIONS, t_chunk=4)
    jax.block_until_ready((q_seq2, h_seq2))
    assert jnp.allclose(q_seq2, q_ref, atol=1e-4, rtol=1e-4)
    assert jnp.allclose(h_seq2, h_ref, atol=1e-4, rtol=1e-4)

    # T not divisible by the chunk (time-padding path).
    q_seq3, h_seq3 = rnn_forward_sequence(obs_seq[:6], h0, params, hidden_dim=HIDDEN,
                                          n_actions=N_ACTIONS, t_chunk=4)
    jax.block_until_ready((q_seq3, h_seq3))
    assert jnp.allclose(q_seq3, q_ref[:6], atol=1e-4, rtol=1e-4)
    assert jnp.allclose(h_seq3, h_ref[:6], atol=1e-4, rtol=1e-4)

    # Single-step API (exact module signature) is the T=1 special case.
    q1, h1 = rnn_forward(obs_seq[0], h0, params,
                         hidden_dim=HIDDEN, n_actions=N_ACTIONS)
    jax.block_until_ready((q1, h1))
    q1_ref, h1_ref = reference_step(obs_seq[0], h0, params, hidden_dim=HIDDEN)
    assert jnp.allclose(q1, q1_ref, atol=1e-4, rtol=1e-4)
    assert jnp.allclose(h1, h1_ref, atol=1e-4, rtol=1e-4)

    print("KERNEL_OK")
</pallas_src>

<mosaic_0001>
module attributes {stable_mosaic.version = 11 : i64} {
  func.func @_rnn_chunk_kernel(%arg0: i32, %arg1: memref<8x8x32xf32, #tpu.memory_space<vmem>>, %arg2: memref<8x32xf32, #tpu.memory_space<vmem>>, %arg3: memref<32x32xf32, #tpu.memory_space<vmem>>, %arg4: memref<32x128xf32, #tpu.memory_space<vmem>>, %arg5: memref<32x128xf32, #tpu.memory_space<vmem>>, %arg6: memref<32x16xf32, #tpu.memory_space<vmem>>, %arg7: memref<1x32xf32, #tpu.memory_space<vmem>>, %arg8: memref<1x128xf32, #tpu.memory_space<vmem>>, %arg9: memref<1x16xf32, #tpu.memory_space<vmem>>, %arg10: memref<8x8x128xf32, #tpu.memory_space<vmem>>, %arg11: memref<8x32xf32, #tpu.memory_space<vmem>>, %arg12: memref<8x8x128xf32, #tpu.memory_space<vmem>>, %arg13: memref<8x8x32xf32, #tpu.memory_space<vmem>>) attributes {dimension_semantics = [#tpu.dimension_semantics<arbitrary>], iteration_bounds = array<i64: 1>, scalar_prefetch = 0 : i64, scratch_operands = 3 : i64, tpu.core_type = #tpu.core_type<tc>, window_params = [{transform_indices = @transform_0, window_bounds = array<i64: 8, 8, 32>}, {pipeline_mode = #tpu.pipeline_mode<synchronous>, transform_indices = @transform_1, window_bounds = array<i64: 8, 32>}, {pipeline_mode = #tpu.pipeline_mode<synchronous>, transform_indices = @transform_2, window_bounds = array<i64: 32, 32>}, {pipeline_mode = #tpu.pipeline_mode<synchronous>, transform_indices = @transform_3, window_bounds = array<i64: 32, 128>}, {pipeline_mode = #tpu.pipeline_mode<synchronous>, transform_indices = @transform_4, window_bounds = array<i64: 32, 128>}, {pipeline_mode = #tpu.pipeline_mode<synchronous>, transform_indices = @transform_5, window_bounds = array<i64: 32, 16>}, {pipeline_mode = #tpu.pipeline_mode<synchronous>, transform_indices = @transform_6, window_bounds = array<i64: 1, 32>}, {pipeline_mode = #tpu.pipeline_mode<synchronous>, transform_indices = @transform_7, window_bounds = array<i64: 1, 128>}, {pipeline_mode = #tpu.pipeline_mode<synchronous>, transform_indices = @transform_8, window_bounds = array<i64: 1, 16>}, {transform_indices = @transform_9, window_bounds = array<i64: 8, 8, 128>}]} {
    %c0_i32 = arith.constant 0 : i32
    %0 = arith.cmpi eq, %arg0, %c0_i32 : i32
    %1 = arith.extui %0 : i1 to i32
    %c0_i32_0 = arith.constant 0 : i32
    %2 = arith.cmpi ne, %1, %c0_i32_0 : i32
    scf.if %2 {
      %c0_135 = arith.constant 0 : index
      %c0_136 = arith.constant 0 : index
      %280 = vector.load %arg2[%c0_135, %c0_136] : memref<8x32xf32, #tpu.memory_space<vmem>>, vector<8x32xf32>
      %c0_137 = arith.constant 0 : index
      %c0_138 = arith.constant 0 : index
      %281 = vector.load %arg11[%c0_137, %c0_138] : memref<8x32xf32, #tpu.memory_space<vmem>>, vector<8x32xf32>
      tpu.vector_store %arg11[%c0_137, %c0_138], %280 {strides = array<i32>} : memref<8x32xf32, #tpu.memory_space<vmem>>, vector<8x32xf32>,
    } else {
    }
    %c0 = arith.constant 0 : index
    %c0_1 = arith.constant 0 : index
    %c0_2 = arith.constant 0 : index
    %3 = vector.load %arg1[%c0, %c0_1, %c0_2] : memref<8x8x32xf32, #tpu.memory_space<vmem>>, vector<8x8x32xf32>
    %4 = vector.shape_cast %3 : vector<8x8x32xf32> to vector<64x32xf32>
    %c0_3 = arith.constant 0 : index
    %c0_4 = arith.constant 0 : index
    %5 = vector.load %arg3[%c0_3, %c0_4] : memref<32x32xf32, #tpu.memory_space<vmem>>, vector<32x32xf32>
    %cst = arith.constant dense<0.000000e+00> : vector<64x32xf32>
    %6 = tpu.matmul %4, %5, %cst {dimension_numbers = #tpu.dot_dimension_numbers<[1], [0], [0], [1], [0, 0, 1, 1], [], []>} : vector<64x32xf32>, vector<32x32xf32>, vector<64x32xf32> -> vector<64x32xf32>
    %c0_5 = arith.constant 0 : index
    %c0_6 = arith.constant 0 : index
    %7 = vector.load %arg7[%c0_5, %c0_6] : memref<1x32xf32, #tpu.memory_space<vmem>>, vector<1x32xf32>
    %8 = vector.broadcast %7 : vector<1x32xf32> to vector<64x32xf32>
    %9 = arith.addf %6, %8 : vector<64x32xf32>
    %cst_7 = arith.constant 0.000000e+00 : f32
    %10 = vector.broadcast %cst_7 : f32 to vector<64x32xf32>
    %11 = arith.maximumf %9, %10 : vector<64x32xf32>
    %c0_8 = arith.constant 0 : index
    %c0_9 = arith.constant 0 : index
    %12 = vector.load %arg4[%c0_8, %c0_9] : memref<32x128xf32, #tpu.memory_space<vmem>>, vector<32x128xf32>
    %cst_10 = arith.constant dense<0.000000e+00> : vector<64x128xf32>
    %13 = tpu.matmul %11, %12, %cst_10 {dimension_numbers = #tpu.dot_dimension_numbers<[1], [0], [0], [1], [0, 0, 1, 1], [], []>} : vector<64x32xf32>, vector<32x128xf32>, vector<64x128xf32> -> vector<64x128xf32>
    %c0_11 = arith.constant 0 : index
    %c0_12 = arith.constant 0 : index
    %14 = vector.load %arg8[%c0_11, %c0_12] : memref<1x128xf32, #tpu.memory_space<vmem>>, vector<1x128xf32>
    %15 = vector.broadcast %14 : vector<1x128xf32> to vector<64x128xf32>
    %16 = arith.addf %13, %15 : vector<64x128xf32>
    %17 = vector.shape_cast %16 : vector<64x128xf32> to vector<8x8x128xf32>
    %c0_13 = arith.constant 0 : index
    %c0_14 = arith.constant 0 : index
    %c0_15 = arith.constant 0 : index
    %18 = vector.load %arg12[%c0_13, %c0_14, %c0_15] : memref<8x8x128xf32, #tpu.memory_space<vmem>>, vector<8x8x128xf32>
    tpu.vector_store %arg12[%c0_13, %c0_14, %c0_15], %17 {strides = array<i32>} : memref<8x8x128xf32, #tpu.memory_space<vmem>>, vector<8x8x128xf32>,
    %c0_16 = arith.constant 0 : index
    %c0_17 = arith.constant 0 : index
    %19 = vector.load %arg5[%c0_16, %c0_17] : memref<32x128xf32, #tpu.memory_space<vmem>>, vector<32x128xf32>
    %c0_i32_18 = arith.constant 0 : i32
    %c1_i32 = arith.constant 1 : i32
    %20 = arith.muli %c0_i32_18, %c1_i32 : i32
    %c0_i32_19 = arith.constant 0 : i32
    %21 = arith.addi %c0_i32_19, %20 : i32
    %c0_20 = arith.constant 0 : index
    %c0_21 = arith.constant 0 : index
    %22 = vector.load %arg11[%c0_20, %c0_21] : memref<8x32xf32, #tpu.memory_space<vmem>>, vector<8x32xf32>
    %23 = arith.index_cast %21 : i32 to index
    %c0_22 = arith.constant 0 : index
    %c0_23 = arith.constant 0 : index
    %24 = vector.load %arg12[%23, %c0_22, %c0_23] : memref<8x8x128xf32, #tpu.memory_space<vmem>>, vector<1x8x128xf32>
    %25 = vector.shape_cast %24 : vector<1x8x128xf32> to vector<8x128xf32>
    %cst_24 = arith.constant dense<0.000000e+00> : vector<8x128xf32>
    %26 = tpu.matmul %22, %19, %cst_24 {dimension_numbers = #tpu.dot_dimension_numbers<[1], [0], [0], [1], [0, 0, 1, 1], [], []>} : vector<8x32xf32>, vector<32x128xf32>, vector<8x128xf32> -> vector<8x128xf32>
    %27 = arith.addf %25, %26 : vector<8x128xf32>
    %28 = vector.extract_strided_slice %27 {offsets = [0, 0], sizes = [8, 64], strides = [1, 1]} : vector<8x128xf32> to vector<8x64xf32>
    %29 = arith.negf %28 : vector<8x64xf32>
    %30 = math.exp %29 : vector<8x64xf32>
    %cst_25 = arith.constant 1.000000e+00 : f32
    %31 = vector.broadcast %cst_25 : f32 to vector<8x64xf32>
    %32 = arith.addf %31, %30 : vector<8x64xf32>
    %33 = arith.divf %31, %32 : vector<8x64xf32>
    %34 = vector.extract_strided_slice %33 {offsets = [0, 0], sizes = [8, 32], strides = [1, 1]} : vector<8x64xf32> to vector<8x32xf32>
    %35 = vector.extract_strided_slice %33 {offsets = [0, 32], sizes = [8, 32], strides = [1, 1]} : vector<8x64xf32> to vector<8x32xf32>
    %36 = vector.extract_strided_slice %27 {offsets = [0, 64], sizes = [8, 32], strides = [1, 1]} : vector<8x128xf32> to vector<8x32xf32>
    %37 = vector.extract_strided_slice %27 {offsets = [0, 96], sizes = [8, 32], strides = [1, 1]} : vector<8x128xf32> to vector<8x32xf32>
    %38 = arith.mulf %34, %37 : vector<8x32xf32>
    %39 = arith.addf %36, %38 : vector<8x32xf32>
    %40 = math.tanh %39 : vector<8x32xf32>
    %cst_26 = arith.constant 1.000000e+00 : f32
    %41 = vector.broadcast %cst_26 : f32 to vector<8x32xf32>
    %42 = arith.subf %41, %35 : vector<8x32xf32>
    %43 = arith.mulf %42, %40 : vector<8x32xf32>
    %44 = arith.mulf %35, %22 : vector<8x32xf32>
    %45 = arith.addf %43, %44 : vector<8x32xf32>
    %c0_27 = arith.constant 0 : index
    %c0_28 = arith.constant 0 : index
    %46 = vector.load %arg11[%c0_27, %c0_28] : memref<8x32xf32, #tpu.memory_space<vmem>>, vector<8x32xf32>
    tpu.vector_store %arg11[%c0_27, %c0_28], %45 {strides = array<i32>} : memref<8x32xf32, #tpu.memory_space<vmem>>, vector<8x32xf32>,
    %47 = arith.index_cast %21 : i32 to index
    %c0_29 = arith.constant 0 : index
    %c0_30 = arith.constant 0 : index
    %48 = vector.load %arg13[%47, %c0_29, %c0_30] : memref<8x8x32xf32, #tpu.memory_space<vmem>>, vector<1x8x32xf32>
    %49 = vector.shape_cast %48 : vector<1x8x32xf32> to vector<8x32xf32>
    %50 = vector.shape_cast %45 : vector<8x32xf32> to vector<1x8x32xf32>
    tpu.vector_store %arg13[%47, %c0_29, %c0_30], %50 {strides = array<i32>} : memref<8x8x32xf32, #tpu.memory_space<vmem>>, vector<1x8x32xf32>,
    %c1_i32_31 = arith.constant 1 : i32
    %c1_i32_32 = arith.constant 1 : i32
    %51 = arith.muli %c1_i32_31, %c1_i32_32 : i32
    %c0_i32_33 = arith.constant 0 : i32
    %52 = arith.addi %c0_i32_33, %51 : i32
    %c0_34 = arith.constant 0 : index
    %c0_35 = arith.constant 0 : index
    %53 = vector.load %arg11[%c0_34, %c0_35] : memref<8x32xf32, #tpu.memory_space<vmem>>, vector<8x32xf32>
    %54 = arith.index_cast %52 : i32 to index
    %c0_36 = arith.constant 0 : index
    %c0_37 = arith.constant 0 : index
    %55 = vector.load %arg12[%54, %c0_36, %c0_37] : memref<8x8x128xf32, #tpu.memory_space<vmem>>, vector<1x8x128xf32>
    %56 = vector.shape_cast %55 : vector<1x8x128xf32> to vector<8x128xf32>
    %cst_38 = arith.constant dense<0.000000e+00> : vector<8x128xf32>
    %57 = tpu.matmul %53, %19, %cst_38 {dimension_numbers = #tpu.dot_dimension_numbers<[1], [0], [0], [1], [0, 0, 1, 1], [], []>} : vector<8x32xf32>, vector<32x128xf32>, vector<8x128xf32> -> vector<8x128xf32>
    %58 = arith.addf %56, %57 : vector<8x128xf32>
    %59 = vector.extract_strided_slice %58 {offsets = [0, 0], sizes = [8, 64], strides = [1, 1]} : vector<8x128xf32> to vector<8x64xf32>
    %60 = arith.negf %59 : vector<8x64xf32>
    %61 = math.exp %60 : vector<8x64xf32>
    %cst_39 = arith.constant 1.000000e+00 : f32
    %62 = vector.broadcast %cst_39 : f32 to vector<8x64xf32>
    %63 = arith.addf %62, %61 : vector<8x64xf32>
    %64 = arith.divf %62, %63 : vector<8x64xf32>
    %65 = vector.extract_strided_slice %64 {offsets = [0, 0], sizes = [8, 32], strides = [1, 1]} : vector<8x64xf32> to vector<8x32xf32>
    %66 = vector.extract_strided_slice %64 {offsets = [0, 32], sizes = [8, 32], strides = [1, 1]} : vector<8x64xf32> to vector<8x32xf32>
    %67 = vector.extract_strided_slice %58 {offsets = [0, 64], sizes = [8, 32], strides = [1, 1]} : vector<8x128xf32> to vector<8x32xf32>
    %68 = vector.extract_strided_slice %58 {offsets = [0, 96], sizes = [8, 32], strides = [1, 1]} : vector<8x128xf32> to vector<8x32xf32>
    %69 = arith.mulf %65, %68 : vector<8x32xf32>
    %70 = arith.addf %67, %69 : vector<8x32xf32>
    %71 = math.tanh %70 : vector<8x32xf32>
    %cst_40 = arith.constant 1.000000e+00 : f32
    %72 = vector.broadcast %cst_40 : f32 to vector<8x32xf32>
    %73 = arith.subf %72, %66 : vector<8x32xf32>
    %74 = arith.mulf %73, %71 : vector<8x32xf32>
    %75 = arith.mulf %66, %53 : vector<8x32xf32>
    %76 = arith.addf %74, %75 : vector<8x32xf32>
    %c0_41 = arith.constant 0 : index
    %c0_42 = arith.constant 0 : index
    %77 = vector.load %arg11[%c0_41, %c0_42] : memref<8x32xf32, #tpu.memory_space<vmem>>, vector<8x32xf32>
    tpu.vector_store %arg11[%c0_41, %c0_42], %76 {strides = array<i32>} : memref<8x32xf32, #tpu.memory_space<vmem>>, vector<8x32xf32>,
    %78 = arith.index_cast %52 : i32 to index
    %c0_43 = arith.constant 0 : index
    %c0_44 = arith.constant 0 : index
    %79 = vector.load %arg13[%78, %c0_43, %c0_44] : memref<8x8x32xf32, #tpu.memory_space<vmem>>, vector<1x8x32xf32>
    %80 = vector.shape_cast %79 : vector<1x8x32xf32> to vector<8x32xf32>
    %81 = vector.shape_cast %76 : vector<8x32xf32> to vector<1x8x32xf32>
    tpu.vector_store %arg13[%78, %c0_43, %c0_44], %81 {strides = array<i32>} : memref<8x8x32xf32, #tpu.memory_space<vmem>>, vector<1x8x32xf32>,
    %c2_i32 = arith.constant 2 : i32
    %c1_i32_45 = arith.constant 1 : i32
    %82 = arith.muli %c2_i32, %c1_i32_45 : i32
    %c0_i32_46 = arith.constant 0 : i32
    %83 = arith.addi %c0_i32_46, %82 : i32
    %c0_47 = arith.constant 0 : index
    %c0_48 = arith.constant 0 : index
    %84 = vector.load %arg11[%c0_47, %c0_48] : memref<8x32xf32, #tpu.memory_space<vmem>>, vector<8x32xf32>
    %85 = arith.index_cast %83 : i32 to index
    %c0_49 = arith.constant 0 : index
    %c0_50 = arith.constant 0 : index
    %86 = vector.load %arg12[%85, %c0_49, %c0_50] : memref<8x8x128xf32, #tpu.memory_space<vmem>>, vector<1x8x128xf32>
    %87 = vector.shape_cast %86 : vector<1x8x128xf32> to vector<8x128xf32>
    %cst_51 = arith.constant dense<0.000000e+00> : vector<8x128xf32>
    %88 = tpu.matmul %84, %19, %cst_51 {dimension_numbers = #tpu.dot_dimension_numbers<[1], [0], [0], [1], [0, 0, 1, 1], [], []>} : vector<8x32xf32>, vector<32x128xf32>, vector<8x128xf32> -> vector<8x128xf32>
    %89 = arith.addf %87, %88 : vector<8x128xf32>
    %90 = vector.extract_strided_slice %89 {offsets = [0, 0], sizes = [8, 64], strides = [1, 1]} : vector<8x128xf32> to vector<8x64xf32>
    %91 = arith.negf %90 : vector<8x64xf32>
    %92 = math.exp %91 : vector<8x64xf32>
    %cst_52 = arith.constant 1.000000e+00 : f32
    %93 = vector.broadcast %cst_52 : f32 to vector<8x64xf32>
    %94 = arith.addf %93, %92 : vector<8x64xf32>
    %95 = arith.divf %93, %94 : vector<8x64xf32>
    %96 = vector.extract_strided_slice %95 {offsets = [0, 0], sizes = [8, 32], strides = [1, 1]} : vector<8x64xf32> to vector<8x32xf32>
    %97 = vector.extract_strided_slice %95 {offsets = [0, 32], sizes = [8, 32], strides = [1, 1]} : vector<8x64xf32> to vector<8x32xf32>
    %98 = vector.extract_strided_slice %89 {offsets = [0, 64], sizes = [8, 32], strides = [1, 1]} : vector<8x128xf32> to vector<8x32xf32>
    %99 = vector.extract_strided_slice %89 {offsets = [0, 96], sizes = [8, 32], strides = [1, 1]} : vector<8x128xf32> to vector<8x32xf32>
    %100 = arith.mulf %96, %99 : vector<8x32xf32>
    %101 = arith.addf %98, %100 : vector<8x32xf32>
    %102 = math.tanh %101 : vector<8x32xf32>
    %cst_53 = arith.constant 1.000000e+00 : f32
    %103 = vector.broadcast %cst_53 : f32 to vector<8x32xf32>
    %104 = arith.subf %103, %97 : vector<8x32xf32>
    %105 = arith.mulf %104, %102 : vector<8x32xf32>
    %106 = arith.mulf %97, %84 : vector<8x32xf32>
    %107 = arith.addf %105, %106 : vector<8x32xf32>
    %c0_54 = arith.constant 0 : index
    %c0_55 = arith.constant 0 : index
    %108 = vector.load %arg11[%c0_54, %c0_55] : memref<8x32xf32, #tpu.memory_space<vmem>>, vector<8x32xf32>
    tpu.vector_store %arg11[%c0_54, %c0_55], %107 {strides = array<i32>} : memref<8x32xf32, #tpu.memory_space<vmem>>, vector<8x32xf32>,
    %109 = arith.index_cast %83 : i32 to index
    %c0_56 = arith.constant 0 : index
    %c0_57 = arith.constant 0 : index
    %110 = vector.load %arg13[%109, %c0_56, %c0_57] : memref<8x8x32xf32, #tpu.memory_space<vmem>>, vector<1x8x32xf32>
    %111 = vector.shape_cast %110 : vector<1x8x32xf32> to vector<8x32xf32>
    %112 = vector.shape_cast %107 : vector<8x32xf32> to vector<1x8x32xf32>
    tpu.vector_store %arg13[%109, %c0_56, %c0_57], %112 {strides = array<i32>} : memref<8x8x32xf32, #tpu.memory_space<vmem>>, vector<1x8x32xf32>,
    %c3_i32 = arith.constant 3 : i32
    %c1_i32_58 = arith.constant 1 : i32
    %113 = arith.muli %c3_i32, %c1_i32_58 : i32
    %c0_i32_59 = arith.constant 0 : i32
    %114 = arith.addi %c0_i32_59, %113 : i32
    %c0_60 = arith.constant 0 : index
    %c0_61 = arith.constant 0 : index
    %115 = vector.load %arg11[%c0_60, %c0_61] : memref<8x32xf32, #tpu.memory_space<vmem>>, vector<8x32xf32>
    %116 = arith.index_cast %114 : i32 to index
    %c0_62 = arith.constant 0 : index
    %c0_63 = arith.constant 0 : index
    %117 = vector.load %arg12[%116, %c0_62, %c0_63] : memref<8x8x128xf32, #tpu.memory_space<vmem>>, vector<1x8x128xf32>
    %118 = vector.shape_cast %117 : vector<1x8x128xf32> to vector<8x128xf32>
    %cst_64 = arith.constant dense<0.000000e+00> : vector<8x128xf32>
    %119 = tpu.matmul %115, %19, %cst_64 {dimension_numbers = #tpu.dot_dimension_numbers<[1], [0], [0], [1], [0, 0, 1, 1], [], []>} : vector<8x32xf32>, vector<32x128xf32>, vector<8x128xf32> -> vector<8x128xf32>
    %120 = arith.addf %118, %119 : vector<8x128xf32>
    %121 = vector.extract_strided_slice %120 {offsets = [0, 0], sizes = [8, 64], strides = [1, 1]} : vector<8x128xf32> to vector<8x64xf32>
    %122 = arith.negf %121 : vector<8x64xf32>
    %123 = math.exp %122 : vector<8x64xf32>
    %cst_65 = arith.constant 1.000000e+00 : f32
    %124 = vector.broadcast %cst_65 : f32 to vector<8x64xf32>
    %125 = arith.addf %124, %123 : vector<8x64xf32>
    %126 = arith.divf %124, %125 : vector<8x64xf32>
    %127 = vector.extract_strided_slice %126 {offsets = [0, 0], sizes = [8, 32], strides = [1, 1]} : vector<8x64xf32> to vector<8x32xf32>
    %128 = vector.extract_strided_slice %126 {offsets = [0, 32], sizes = [8, 32], strides = [1, 1]} : vector<8x64xf32> to vector<8x32xf32>
    %129 = vector.extract_strided_slice %120 {offsets = [0, 64], sizes = [8, 32], strides = [1, 1]} : vector<8x128xf32> to vector<8x32xf32>
    %130 = vector.extract_strided_slice %120 {offsets = [0, 96], sizes = [8, 32], strides = [1, 1]} : vector<8x128xf32> to vector<8x32xf32>
    %131 = arith.mulf %127, %130 : vector<8x32xf32>
    %132 = arith.addf %129, %131 : vector<8x32xf32>
    %133 = math.tanh %132 : vector<8x32xf32>
    %cst_66 = arith.constant 1.000000e+00 : f32
    %134 = vector.broadcast %cst_66 : f32 to vector<8x32xf32>
    %135 = arith.subf %134, %128 : vector<8x32xf32>
    %136 = arith.mulf %135, %133 : vector<8x32xf32>
    %137 = arith.mulf %128, %115 : vector<8x32xf32>
    %138 = arith.addf %136, %137 : vector<8x32xf32>
    %c0_67 = arith.constant 0 : index
    %c0_68 = arith.constant 0 : index
    %139 = vector.load %arg11[%c0_67, %c0_68] : memref<8x32xf32, #tpu.memory_space<vmem>>, vector<8x32xf32>
    tpu.vector_store %arg11[%c0_67, %c0_68], %138 {strides = array<i32>} : memref<8x32xf32, #tpu.memory_space<vmem>>, vector<8x32xf32>,
    %140 = arith.index_cast %114 : i32 to index
    %c0_69 = arith.constant 0 : index
    %c0_70 = arith.constant 0 : index
    %141 = vector.load %arg13[%140, %c0_69, %c0_70] : memref<8x8x32xf32, #tpu.memory_space<vmem>>, vector<1x8x32xf32>
    %142 = vector.shape_cast %141 : vector<1x8x32xf32> to vector<8x32xf32>
    %143 = vector.shape_cast %138 : vector<8x32xf32> to vector<1x8x32xf32>
    tpu.vector_store %arg13[%140, %c0_69, %c0_70], %143 {strides = array<i32>} : memref<8x8x32xf32, #tpu.memory_space<vmem>>, vector<1x8x32xf32>,
    %c4_i32 = arith.constant 4 : i32
    %c1_i32_71 = arith.constant 1 : i32
    %144 = arith.muli %c4_i32, %c1_i32_71 : i32
    %c0_i32_72 = arith.constant 0 : i32
    %145 = arith.addi %c0_i32_72, %144 : i32
    %c0_73 = arith.constant 0 : index
    %c0_74 = arith.constant 0 : index
    %146 = vector.load %arg11[%c0_73, %c0_74] : memref<8x32xf32, #tpu.memory_space<vmem>>, vector<8x32xf32>
    %147 = arith.index_cast %145 : i32 to index
    %c0_75 = arith.constant 0 : index
    %c0_76 = arith.constant 0 : index
    %148 = vector.load %arg12[%147, %c0_75, %c0_76] : memref<8x8x128xf32, #tpu.memory_space<vmem>>, vector<1x8x128xf32>
    %149 = vector.shape_cast %148 : vector<1x8x128xf32> to vector<8x128xf32>
    %cst_77 = arith.constant dense<0.000000e+00> : vector<8x128xf32>
    %150 = tpu.matmul %146, %19, %cst_77 {dimension_numbers = #tpu.dot_dimension_numbers<[1], [0], [0], [1], [0, 0, 1, 1], [], []>} : vector<8x32xf32>, vector<32x128xf32>, vector<8x128xf32> -> vector<8x128xf32>
    %151 = arith.addf %149, %150 : vector<8x128xf32>
    %152 = vector.extract_strided_slice %151 {offsets = [0, 0], sizes = [8, 64], strides = [1, 1]} : vector<8x128xf32> to vector<8x64xf32>
    %153 = arith.negf %152 : vector<8x64xf32>
    %154 = math.exp %153 : vector<8x64xf32>
    %cst_78 = arith.constant 1.000000e+00 : f32
    %155 = vector.broadcast %cst_78 : f32 to vector<8x64xf32>
    %156 = arith.addf %155, %154 : vector<8x64xf32>
    %157 = arith.divf %155, %156 : vector<8x64xf32>
    %158 = vector.extract_strided_slice %157 {offsets = [0, 0], sizes = [8, 32], strides = [1, 1]} : vector<8x64xf32> to vector<8x32xf32>
    %159 = vector.extract_strided_slice %157 {offsets = [0, 32], sizes = [8, 32], strides = [1, 1]} : vector<8x64xf32> to vector<8x32xf32>
    %160 = vector.extract_strided_slice %151 {offsets = [0, 64], sizes = [8, 32], strides = [1, 1]} : vector<8x128xf32> to vector<8x32xf32>
    %161 = vector.extract_strided_slice %151 {offsets = [0, 96], sizes = [8, 32], strides = [1, 1]} : vector<8x128xf32> to vector<8x32xf32>
    %162 = arith.mulf %158, %161 : vector<8x32xf32>
    %163 = arith.addf %160, %162 : vector<8x32xf32>
    %164 = math.tanh %163 : vector<8x32xf32>
    %cst_79 = arith.constant 1.000000e+00 : f32
    %165 = vector.broadcast %cst_79 : f32 to vector<8x32xf32>
    %166 = arith.subf %165, %159 : vector<8x32xf32>
    %167 = arith.mulf %166, %164 : vector<8x32xf32>
    %168 = arith.mulf %159, %146 : vector<8x32xf32>
    %169 = arith.addf %167, %168 : vector<8x32xf32>
    %c0_80 = arith.constant 0 : index
    %c0_81 = arith.constant 0 : index
    %170 = vector.load %arg11[%c0_80, %c0_81] : memref<8x32xf32, #tpu.memory_space<vmem>>, vector<8x32xf32>
    tpu.vector_store %arg11[%c0_80, %c0_81], %169 {strides = array<i32>} : memref<8x32xf32, #tpu.memory_space<vmem>>, vector<8x32xf32>,
    %171 = arith.index_cast %145 : i32 to index
    %c0_82 = arith.constant 0 : index
    %c0_83 = arith.constant 0 : index
    %172 = vector.load %arg13[%171, %c0_82, %c0_83] : memref<8x8x32xf32, #tpu.memory_space<vmem>>, vector<1x8x32xf32>
    %173 = vector.shape_cast %172 : vector<1x8x32xf32> to vector<8x32xf32>
    %174 = vector.shape_cast %169 : vector<8x32xf32> to vector<1x8x32xf32>
    tpu.vector_store %arg13[%171, %c0_82, %c0_83], %174 {strides = array<i32>} : memref<8x8x32xf32, #tpu.memory_space<vmem>>, vector<1x8x32xf32>,
    %c5_i32 = arith.constant 5 : i32
    %c1_i32_84 = arith.constant 1 : i32
    %175 = arith.muli %c5_i32, %c1_i32_84 : i32
    %c0_i32_85 = arith.constant 0 : i32
    %176 = arith.addi %c0_i32_85, %175 : i32
    %c0_86 = arith.constant 0 : index
    %c0_87 = arith.constant 0 : index
    %177 = vector.load %arg11[%c0_86, %c0_87] : memref<8x32xf32, #tpu.memory_space<vmem>>, vector<8x32xf32>
    %178 = arith.index_cast %176 : i32 to index
    %c0_88 = arith.constant 0 : index
    %c0_89 = arith.constant 0 : index
    %179 = vector.load %arg12[%178, %c0_88, %c0_89] : memref<8x8x128xf32, #tpu.memory_space<vmem>>, vector<1x8x128xf32>
    %180 = vector.shape_cast %179 : vector<1x8x128xf32> to vector<8x128xf32>
    %cst_90 = arith.constant dense<0.000000e+00> : vector<8x128xf32>
    %181 = tpu.matmul %177, %19, %cst_90 {dimension_numbers = #tpu.dot_dimension_numbers<[1], [0], [0], [1], [0, 0, 1, 1], [], []>} : vector<8x32xf32>, vector<32x128xf32>, vector<8x128xf32> -> vector<8x128xf32>
    %182 = arith.addf %180, %181 : vector<8x128xf32>
    %183 = vector.extract_strided_slice %182 {offsets = [0, 0], sizes = [8, 64], strides = [1, 1]} : vector<8x128xf32> to vector<8x64xf32>
    %184 = arith.negf %183 : vector<8x64xf32>
    %185 = math.exp %184 : vector<8x64xf32>
    %cst_91 = arith.constant 1.000000e+00 : f32
    %186 = vector.broadcast %cst_91 : f32 to vector<8x64xf32>
    %187 = arith.addf %186, %185 : vector<8x64xf32>
    %188 = arith.divf %186, %187 : vector<8x64xf32>
    %189 = vector.extract_strided_slice %188 {offsets = [0, 0], sizes = [8, 32], strides = [1, 1]} : vector<8x64xf32> to vector<8x32xf32>
    %190 = vector.extract_strided_slice %188 {offsets = [0, 32], sizes = [8, 32], strides = [1, 1]} : vector<8x64xf32> to vector<8x32xf32>
    %191 = vector.extract_strided_slice %182 {offsets = [0, 64], sizes = [8, 32], strides = [1, 1]} : vector<8x128xf32> to vector<8x32xf32>
    %192 = vector.extract_strided_slice %182 {offsets = [0, 96], sizes = [8, 32], strides = [1, 1]} : vector<8x128xf32> to vector<8x32xf32>
    %193 = arith.mulf %189, %192 : vector<8x32xf32>
    %194 = arith.addf %191, %193 : vector<8x32xf32>
    %195 = math.tanh %194 : vector<8x32xf32>
    %cst_92 = arith.constant 1.000000e+00 : f32
    %196 = vector.broadcast %cst_92 : f32 to vector<8x32xf32>
    %197 = arith.subf %196, %190 : vector<8x32xf32>
    %198 = arith.mulf %197, %195 : vector<8x32xf32>
    %199 = arith.mulf %190, %177 : vector<8x32xf32>
    %200 = arith.addf %198, %199 : vector<8x32xf32>
    %c0_93 = arith.constant 0 : index
    %c0_94 = arith.constant 0 : index
    %201 = vector.load %arg11[%c0_93, %c0_94] : memref<8x32xf32, #tpu.memory_space<vmem>>, vector<8x32xf32>
    tpu.vector_store %arg11[%c0_93, %c0_94], %200 {strides = array<i32>} : memref<8x32xf32, #tpu.memory_space<vmem>>, vector<8x32xf32>,
    %202 = arith.index_cast %176 : i32 to index
    %c0_95 = arith.constant 0 : index
    %c0_96 = arith.constant 0 : index
    %203 = vector.load %arg13[%202, %c0_95, %c0_96] : memref<8x8x32xf32, #tpu.memory_space<vmem>>, vector<1x8x32xf32>
    %204 = vector.shape_cast %203 : vector<1x8x32xf32> to vector<8x32xf32>
    %205 = vector.shape_cast %200 : vector<8x32xf32> to vector<1x8x32xf32>
    tpu.vector_store %arg13[%202, %c0_95, %c0_96], %205 {strides = array<i32>} : memref<8x8x32xf32, #tpu.memory_space<vmem>>, vector<1x8x32xf32>,
    %c6_i32 = arith.constant 6 : i32
    %c1_i32_97 = arith.constant 1 : i32
    %206 = arith.muli %c6_i32, %c1_i32_97 : i32
    %c0_i32_98 = arith.constant 0 : i32
    %207 = arith.addi %c0_i32_98, %206 : i32
    %c0_99 = arith.constant 0 : index
    %c0_100 = arith.constant 0 : index
    %208 = vector.load %arg11[%c0_99, %c0_100] : memref<8x32xf32, #tpu.memory_space<vmem>>, vector<8x32xf32>
    %209 = arith.index_cast %207 : i32 to index
    %c0_101 = arith.constant 0 : index
    %c0_102 = arith.constant 0 : index
    %210 = vector.load %arg12[%209, %c0_101, %c0_102] : memref<8x8x128xf32, #tpu.memory_space<vmem>>, vector<1x8x128xf32>
    %211 = vector.shape_cast %210 : vector<1x8x128xf32> to vector<8x128xf32>
    %cst_103 = arith.constant dense<0.000000e+00> : vector<8x128xf32>
    %212 = tpu.matmul %208, %19, %cst_103 {dimension_numbers = #tpu.dot_dimension_numbers<[1], [0], [0], [1], [0, 0, 1, 1], [], []>} : vector<8x32xf32>, vector<32x128xf32>, vector<8x128xf32> -> vector<8x128xf32>
    %213 = arith.addf %211, %212 : vector<8x128xf32>
    %214 = vector.extract_strided_slice %213 {offsets = [0, 0], sizes = [8, 64], strides = [1, 1]} : vector<8x128xf32> to vector<8x64xf32>
    %215 = arith.negf %214 : vector<8x64xf32>
    %216 = math.exp %215 : vector<8x64xf32>
    %cst_104 = arith.constant 1.000000e+00 : f32
    %217 = vector.broadcast %cst_104 : f32 to vector<8x64xf32>
    %218 = arith.addf %217, %216 : vector<8x64xf32>
    %219 = arith.divf %217, %218 : vector<8x64xf32>
    %220 = vector.extract_strided_slice %219 {offsets = [0, 0], sizes = [8, 32], strides = [1, 1]} : vector<8x64xf32> to vector<8x32xf32>
    %221 = vector.extract_strided_slice %219 {offsets = [0, 32], sizes = [8, 32], strides = [1, 1]} : vector<8x64xf32> to vector<8x32xf32>
    %222 = vector.extract_strided_slice %213 {offsets = [0, 64], sizes = [8, 32], strides = [1, 1]} : vector<8x128xf32> to vector<8x32xf32>
    %223 = vector.extract_strided_slice %213 {offsets = [0, 96], sizes = [8, 32], strides = [1, 1]} : vector<8x128xf32> to vector<8x32xf32>
    %224 = arith.mulf %220, %223 : vector<8x32xf32>
    %225 = arith.addf %222, %224 : vector<8x32xf32>
    %226 = math.tanh %225 : vector<8x32xf32>
    %cst_105 = arith.constant 1.000000e+00 : f32
    %227 = vector.broadcast %cst_105 : f32 to vector<8x32xf32>
    %228 = arith.subf %227, %221 : vector<8x32xf32>
    %229 = arith.mulf %228, %226 : vector<8x32xf32>
    %230 = arith.mulf %221, %208 : vector<8x32xf32>
    %231 = arith.addf %229, %230 : vector<8x32xf32>
    %c0_106 = arith.constant 0 : index
    %c0_107 = arith.constant 0 : index
    %232 = vector.load %arg11[%c0_106, %c0_107] : memref<8x32xf32, #tpu.memory_space<vmem>>, vector<8x32xf32>
    tpu.vector_store %arg11[%c0_106, %c0_107], %231 {strides = array<i32>} : memref<8x32xf32, #tpu.memory_space<vmem>>, vector<8x32xf32>,
    %233 = arith.index_cast %207 : i32 to index
    %c0_108 = arith.constant 0 : index
    %c0_109 = arith.constant 0 : index
    %234 = vector.load %arg13[%233, %c0_108, %c0_109] : memref<8x8x32xf32, #tpu.memory_space<vmem>>, vector<1x8x32xf32>
    %235 = vector.shape_cast %234 : vector<1x8x32xf32> to vector<8x32xf32>
    %236 = vector.shape_cast %231 : vector<8x32xf32> to vector<1x8x32xf32>
    tpu.vector_store %arg13[%233, %c0_108, %c0_109], %236 {strides = array<i32>} : memref<8x8x32xf32, #tpu.memory_space<vmem>>, vector<1x8x32xf32>,
    %c7_i32 = arith.constant 7 : i32
    %c1_i32_110 = arith.constant 1 : i32
    %237 = arith.muli %c7_i32, %c1_i32_110 : i32
    %c0_i32_111 = arith.constant 0 : i32
    %238 = arith.addi %c0_i32_111, %237 : i32
    %c0_112 = arith.constant 0 : index
    %c0_113 = arith.constant 0 : index
    %239 = vector.load %arg11[%c0_112, %c0_113] : memref<8x32xf32, #tpu.memory_space<vmem>>, vector<8x32xf32>
    %240 = arith.index_cast %238 : i32 to index
    %c0_114 = arith.constant 0 : index
    %c0_115 = arith.constant 0 : index
    %241 = vector.load %arg12[%240, %c0_114, %c0_115] : memref<8x8x128xf32, #tpu.memory_space<vmem>>, vector<1x8x128xf32>
    %242 = vector.shape_cast %241 : vector<1x8x128xf32> to vector<8x128xf32>
    %cst_116 = arith.constant dense<0.000000e+00> : vector<8x128xf32>
    %243 = tpu.matmul %239, %19, %cst_116 {dimension_numbers = #tpu.dot_dimension_numbers<[1], [0], [0], [1], [0, 0, 1, 1], [], []>} : vector<8x32xf32>, vector<32x128xf32>, vector<8x128xf32> -> vector<8x128xf32>
    %244 = arith.addf %242, %243 : vector<8x128xf32>
    %245 = vector.extract_strided_slice %244 {offsets = [0, 0], sizes = [8, 64], strides = [1, 1]} : vector<8x128xf32> to vector<8x64xf32>
    %246 = arith.negf %245 : vector<8x64xf32>
    %247 = math.exp %246 : vector<8x64xf32>
    %cst_117 = arith.constant 1.000000e+00 : f32
    %248 = vector.broadcast %cst_117 : f32 to vector<8x64xf32>
    %249 = arith.addf %248, %247 : vector<8x64xf32>
    %250 = arith.divf %248, %249 : vector<8x64xf32>
    %251 = vector.extract_strided_slice %250 {offsets = [0, 0], sizes = [8, 32], strides = [1, 1]} : vector<8x64xf32> to vector<8x32xf32>
    %252 = vector.extract_strided_slice %250 {offsets = [0, 32], sizes = [8, 32], strides = [1, 1]} : vector<8x64xf32> to vector<8x32xf32>
    %253 = vector.extract_strided_slice %244 {offsets = [0, 64], sizes = [8, 32], strides = [1, 1]} : vector<8x128xf32> to vector<8x32xf32>
    %254 = vector.extract_strided_slice %244 {offsets = [0, 96], sizes = [8, 32], strides = [1, 1]} : vector<8x128xf32> to vector<8x32xf32>
    %255 = arith.mulf %251, %254 : vector<8x32xf32>
    %256 = arith.addf %253, %255 : vector<8x32xf32>
    %257 = math.tanh %256 : vector<8x32xf32>
    %cst_118 = arith.constant 1.000000e+00 : f32
    %258 = vector.broadcast %cst_118 : f32 to vector<8x32xf32>
    %259 = arith.subf %258, %252 : vector<8x32xf32>
    %260 = arith.mulf %259, %257 : vector<8x32xf32>
    %261 = arith.mulf %252, %239 : vector<8x32xf32>
    %262 = arith.addf %260, %261 : vector<8x32xf32>
    %c0_119 = arith.constant 0 : index
    %c0_120 = arith.constant 0 : index
    %263 = vector.load %arg11[%c0_119, %c0_120] : memref<8x32xf32, #tpu.memory_space<vmem>>, vector<8x32xf32>
    tpu.vector_store %arg11[%c0_119, %c0_120], %262 {strides = array<i32>} : memref<8x32xf32, #tpu.memory_space<vmem>>, vector<8x32xf32>,
    %264 = arith.index_cast %238 : i32 to index
    %c0_121 = arith.constant 0 : index
    %c0_122 = arith.constant 0 : index
    %265 = vector.load %arg13[%264, %c0_121, %c0_122] : memref<8x8x32xf32, #tpu.memory_space<vmem>>, vector<1x8x32xf32>
    %266 = vector.shape_cast %265 : vector<1x8x32xf32> to vector<8x32xf32>
    %267 = vector.shape_cast %262 : vector<8x32xf32> to vector<1x8x32xf32>
    tpu.vector_store %arg13[%264, %c0_121, %c0_122], %267 {strides = array<i32>} : memref<8x8x32xf32, #tpu.memory_space<vmem>>, vector<1x8x32xf32>,
    %c8_i32 = arith.constant 8 : i32
    %c0_123 = arith.constant 0 : index
    %c0_124 = arith.constant 0 : index
    %c0_125 = arith.constant 0 : index
    %268 = vector.load %arg13[%c0_123, %c0_124, %c0_125] : memref<8x8x32xf32, #tpu.memory_space<vmem>>, vector<8x8x32xf32>
    %269 = vector.shape_cast %268 : vector<8x8x32xf32> to vector<64x32xf32>
    %c0_126 = arith.constant 0 : index
    %c0_127 = arith.constant 0 : index
    %270 = vector.load %arg6[%c0_126, %c0_127] : memref<32x16xf32, #tpu.memory_space<vmem>>, vector<32x16xf32>
    %cst_128 = arith.constant dense<0.000000e+00> : vector<64x16xf32>
    %271 = tpu.matmul %269, %270, %cst_128 {dimension_numbers = #tpu.dot_dimension_numbers<[1], [0], [0], [1], [0, 0, 1, 1], [], []>} : vector<64x32xf32>, vector<32x16xf32>, vector<64x16xf32> -> vector<64x16xf32>
    %c0_129 = arith.constant 0 : index
    %c0_130 = arith.constant 0 : index
    %272 = vector.load %arg9[%c0_129, %c0_130] : memref<1x16xf32, #tpu.memory_space<vmem>>, vector<1x16xf32>
    %273 = vector.broadcast %272 : vector<1x16xf32> to vector<64x16xf32>
    %274 = arith.addf %271, %273 : vector<64x16xf32>
    %275 = vector.shape_cast %268 : vector<8x8x32xf32> to vector<64x32xf32>
    %cst_131 = arith.constant 0.000000e+00 : f32
    %276 = vector.broadcast %cst_131 : f32 to vector<64x80xf32>
    %277 = tpu.concatenate %274, %275, %276 in 1 : vector<64x16xf32>, vector<64x32xf32>, vector<64x80xf32> -> vector<64x128xf32>
    %278 = vector.shape_cast %277 : vector<64x128xf32> to vector<8x8x128xf32>
    %c0_132 = arith.constant 0 : index
    %c0_133 = arith.constant 0 : index
    %c0_134 = arith.constant 0 : index
    %279 = vector.load %arg10[%c0_132, %c0_133, %c0_134] : memref<8x8x128xf32, #tpu.memory_space<vmem>>, vector<8x8x128xf32>
    tpu.vector_store %arg10[%c0_132, %c0_133, %c0_134], %278 {strides = array<i32>} : memref<8x8x128xf32, #tpu.memory_space<vmem>>, vector<8x8x128xf32>,
    return
  }
  func.func @transform_0(%arg0: i32) -> (i32, i32, i32) {
    %c0_i32 = arith.constant 0 : i32
    %c0_i32_0 = arith.constant 0 : i32
    %c0_i32_1 = arith.constant 0 : i32
    return %arg0, %c0_i32, %c0_i32_0 : i32, i32, i32
  }
  func.func @transform_1(%arg0: i32) -> (i32, i32) {
    %c0_i32 = arith.constant 0 : i32
    %c0_i32_0 = arith.constant 0 : i32
    %c0_i32_1 = arith.constant 0 : i32
    return %c0_i32, %c0_i32_0 : i32, i32
  }
  func.func @transform_2(%arg0: i32) -> (i32, i32) {
    %c0_i32 = arith.constant 0 : i32
    %c0_i32_0 = arith.constant 0 : i32
    %c0_i32_1 = arith.constant 0 : i32
    return %c0_i32, %c0_i32_0 : i32, i32
  }
  func.func @transform_3(%arg0: i32) -> (i32, i32) {
    %c0_i32 = arith.constant 0 : i32
    %c0_i32_0 = arith.constant 0 : i32
    %c0_i32_1 = arith.constant 0 : i32
    return %c0_i32, %c0_i32_0 : i32, i32
  }
  func.func @transform_4(%arg0: i32) -> (i32, i32) {
    %c0_i32 = arith.constant 0 : i32
    %c0_i32_0 = arith.constant 0 : i32
    %c0_i32_1 = arith.constant 0 : i32
    return %c0_i32, %c0_i32_0 : i32, i32
  }
  func.func @transform_5(%arg0: i32) -> (i32, i32) {
    %c0_i32 = arith.constant 0 : i32
    %c0_i32_0 = arith.constant 0 : i32
    %c0_i32_1 = arith.constant 0 : i32
    return %c0_i32, %c0_i32_0 : i32, i32
  }
  func.func @transform_6(%arg0: i32) -> (i32, i32) {
    %c0_i32 = arith.constant 0 : i32
    %c0_i32_0 = arith.constant 0 : i32
    %c0_i32_1 = arith.constant 0 : i32
    return %c0_i32, %c0_i32_0 : i32, i32
  }
  func.func @transform_7(%arg0: i32) -> (i32, i32) {
    %c0_i32 = arith.constant 0 : i32
    %c0_i32_0 = arith.constant 0 : i32
    %c0_i32_1 = arith.constant 0 : i32
    return %c0_i32, %c0_i32_0 : i32, i32
  }
  func.func @transform_8(%arg0: i32) -> (i32, i32) {
    %c0_i32 = arith.constant 0 : i32
    %c0_i32_0 = arith.constant 0 : i32
    %c0_i32_1 = arith.constant 0 : i32
    return %c0_i32, %c0_i32_0 : i32, i32
  }
  func.func @transform_9(%arg0: i32) -> (i32, i32, i32) {
    %c0_i32 = arith.constant 0 : i32
    %c0_i32_0 = arith.constant 0 : i32
    %c0_i32_1 = arith.constant 0 : i32
    return %arg0, %c0_i32, %c0_i32_0 : i32, i32, i32
  }
}

</mosaic_0001>

<llo_original>
// kernel: tpu_custom_call.1
$region0: #{tpu_custom_call.1}
  #allocation0 [shape = 'u32[]', space=smem, size = 0x4, offset = 0x4, fixed_abs, tag = 'smem constant byte address 0x4 - core index']
  #allocation1 [shape = 'u32[144,128]{1,0:T(1,128)}', space=vmem, size = 0x12000, scoped, tag = 'internal scratch']
  #allocation2 [shape = 'f32[8,32]{1,0:T(8,128)}', space=vmem, size = 0x1000, scoped, tag = 'scratch operand']
  #allocation3 [shape = 'f32[8,8,128]{2,1,0:T(8,128)}', space=vmem, size = 0x8000, scoped, tag = 'scratch operand']
  #allocation4 [shape = 'f32[8,8,32]{2,1,0:T(8,128)}', space=vmem, size = 0x8000, scoped, tag = 'scratch operand']
  %s0 = inlined_call_operand.hbm [shape: f32[8,8,32], index: 0, kind: input, shape index: {}]
  %s1 = inlined_call_operand.vmem [shape: f32[8,32], index: 1, kind: input, shape index: {}]
  %s2 = inlined_call_operand.vmem [shape: f32[32,32], index: 2, kind: input, shape index: {}]
  %s3 = inlined_call_operand.hbm [shape: f32[32,128], index: 3, kind: input, shape index: {}]
  %s4 = inlined_call_operand.hbm [shape: f32[32,128], index: 4, kind: input, shape index: {}]
  %s5 = inlined_call_operand.vmem [shape: f32[32,16], index: 5, kind: input, shape index: {}]
  %s6 = inlined_call_operand.vmem [shape: f32[1,32], index: 6, kind: input, shape index: {}]
  %s7 = inlined_call_operand.vmem [shape: f32[1,128], index: 7, kind: input, shape index: {}]
  %s8 = inlined_call_operand.vmem [shape: f32[1,16], index: 8, kind: input, shape index: {}]
  %s9 = inlined_call_operand.hbm [shape: f32[8,8,128], index: 9, kind: output, shape index: {}]
  %s10 = sld [smem:[#allocation0]]
  $region62: #{tpu_custom_call.1} parent=0
    _
  %s12 = ssub.s32 1, %s10
  %s13 = scalar_select 0, %s12, %s10
  $region1: #{tpu_custom_call.1} parent=0
    #allocation5 [shape = 'u8[32768]{0}', space=vmem, size = 0x8000, scoped, tag = 'input window, operand 0, single buffered']
    #allocation6 [shape = 's32[1]{0}', space=sflag, size = 0x4, scoped, tag = 'scoped memory for tpu_custom_call.1']
    #allocation7 [shape = 's32[1]{0}', space=sflag, size = 0x4, scoped, tag = 'scoped memory for tpu_custom_call.1']
    #allocation8 [shape = 'u8[16384]{0}', space=vmem, size = 0x4000, scoped, tag = 'input window, operand 3, single buffered']
    #allocation9 [shape = 's32[1]{0}', space=sflag, size = 0x4, scoped, tag = 'scoped memory for tpu_custom_call.1']
    #allocation10 [shape = 'u8[16384]{0}', space=vmem, size = 0x4000, scoped, tag = 'input window, operand 4, single buffered']
    #allocation11 [shape = 'u8[32768]{0}', space=vmem, size = 0x8000, scoped, tag = 'output window, operand 0, single buffered']
    %14 = vsyncpa [#allocation6], 0
    %15 = vsyncpa [#allocation9], 0
    %16 = vsyncpa [#allocation7], 0
    // Predicated region
    $region2: #{tpu_custom_call.1} parent=1 // pred_check
      _
    $region3: #{tpu_custom_call.1} parent=1 // pred_check_branch
      %18 = sbr.rel (0) target = $region5
    $region4: #{tpu_custom_call.1} parent=1 // pred_region
      %s20 = ssub.s32 1024, 1024
      %21 = vsyncadd [#allocation6], %s20
      %s22 = sshll.u32 [#allocation5], 4
      %s23 = int_to_ptr.vmem [resolvable:$true] %s22
      %28 = dma.hbm_to_vmem [thread:$0]  %s0, 1024, %s23, [#allocation6], 128, 128, 8
    $region5: #{tpu_custom_call.1} parent=1 // pred_fallthru
      _
    // Predicated region
    $region6: #{tpu_custom_call.1} parent=1 // pred_check
      _
    $region7: #{tpu_custom_call.1} parent=1 // pred_check_branch
      %30 = sbr.rel (0) target = $region9
    $region8: #{tpu_custom_call.1} parent=1 // pred_region
      _
    $region9: #{tpu_custom_call.1} parent=1 // pred_fallthru
      _
    // Predicated region
    $region10: #{tpu_custom_call.1} parent=1 // pred_check
      _
    $region11: #{tpu_custom_call.1} parent=1 // pred_check_branch
      %32 = sbr.rel (0) target = $region13
    $region12: #{tpu_custom_call.1} parent=1 // pred_region
      _
    $region13: #{tpu_custom_call.1} parent=1 // pred_fallthru
      _
    // Predicated region
    $region14: #{tpu_custom_call.1} parent=1 // pred_check
      _
    $region15: #{tpu_custom_call.1} parent=1 // pred_check_branch
      %34 = sbr.rel (0) target = $region17
    $region16: #{tpu_custom_call.1} parent=1 // pred_region
      %s36 = ssub.s32 512, 512
      %37 = vsyncadd [#allocation9], %s36
      %s38 = sshll.u32 [#allocation8], 4
      %s39 = int_to_ptr.vmem [resolvable:$true] %s38
      %44 = dma.hbm_to_vmem [thread:$0]  %s3, 512, %s39, [#allocation9], 128, 128, 8
    $region17: #{tpu_custom_call.1} parent=1 // pred_fallthru
      _
    // Predicated region
    $region18: #{tpu_custom_call.1} parent=1 // pred_check
      _
    $region19: #{tpu_custom_call.1} parent=1 // pred_check_branch
      %46 = sbr.rel (0) target = $region21
    $region20: #{tpu_custom_call.1} parent=1 // pred_region
      %s48 = ssub.s32 512, 512
      %49 = vsyncadd [#allocation9], %s48
      %s50 = sshll.u32 [#allocation10], 4
      %s51 = int_to_ptr.vmem [resolvable:$true] %s50
      %56 = dma.hbm_to_vmem [thread:$0]  %s4, 512, %s51, [#allocation9], 128, 128, 8
    $region21: #{tpu_custom_call.1} parent=1 // pred_fallthru
      _
    // Predicated region
    $region22: #{tpu_custom_call.1} parent=1 // pred_check
      _
    $region23: #{tpu_custom_call.1} parent=1 // pred_check_branch
      %58 = sbr.rel (0) target = $region25
    $region24: #{tpu_custom_call.1} parent=1 // pred_region
      _
    $region25: #{tpu_custom_call.1} parent=1 // pred_fallthru
      _
    // Predicated region
    $region26: #{tpu_custom_call.1} parent=1 // pred_check
      _
    $region27: #{tpu_custom_call.1} parent=1 // pred_check_branch
      %60 = sbr.rel (0) target = $region29
    $region28: #{tpu_custom_call.1} parent=1 // pred_region
      _
    $region29: #{tpu_custom_call.1} parent=1 // pred_fallthru
      _
    // Predicated region
    $region30: #{tpu_custom_call.1} parent=1 // pred_check
      _
    $region31: #{tpu_custom_call.1} parent=1 // pred_check_branch
      %62 = sbr.rel (0) target = $region33
    $region32: #{tpu_custom_call.1} parent=1 // pred_region
      _
    $region33: #{tpu_custom_call.1} parent=1 // pred_fallthru
      _
    // Predicated region
    $region34: #{tpu_custom_call.1} parent=1 // pred_check
      _
    $region35: #{tpu_custom_call.1} parent=1 // pred_check_branch
      %64 = sbr.rel (0) target = $region37
    $region36: #{tpu_custom_call.1} parent=1 // pred_region
      _
    $region37: #{tpu_custom_call.1} parent=1 // pred_fallthru
      _
    // Predicated region
    $region38: #{tpu_custom_call.1} parent=1 // pred_check
      _
    $region39: #{tpu_custom_call.1} parent=1 // pred_check_branch
      %66 = sbr.rel (0) target = $region41
    $region40: #{tpu_custom_call.1} parent=1 // pred_region
      %67 = dma.done [#allocation6], 1024
    $region41: #{tpu_custom_call.1} parent=1 // pred_fallthru
      _
    // Predicated region
    $region42: #{tpu_custom_call.1} parent=1 // pred_check
      _
    $region43: #{tpu_custom_call.1} parent=1 // pred_check_branch
      %69 = sbr.rel (0) target = $region45
    $region44: #{tpu_custom_call.1} parent=1 // pred_region
      %70 = dma.done [#allocation9], 512
    $region45: #{tpu_custom_call.1} parent=1 // pred_fallthru
      _
    // Predicated region
    $region46: #{tpu_custom_call.1} parent=1 // pred_check
      _
    $region47: #{tpu_custom_call.1} parent=1 // pred_check_branch
      %72 = sbr.rel (0) target = $region49
    $region48: #{tpu_custom_call.1} parent=1 // pred_region
      %73 = dma.done [#allocation9], 512
    $region49: #{tpu_custom_call.1} parent=1 // pred_fallthru
      _
    %p74 = scmp.eq.s32.totalorder 0, 0
    // Predicated region
    $region50: #{tpu_custom_call.1} parent=1 // pred_check
      %p75 = pneg %p74
    $region51: #{tpu_custom_call.1} parent=1 // pred_check_branch
      %77 = sbr.rel (%p75) target = $region53
    $region52: #{tpu_custom_call.1} parent=1 // pred_region
      %v78 = vld [vmem:[%s1] sm:$0xff]
      %vm79 = vcmask 261120
      %80 = vst.msk [vmem:[#allocation2] sm:$0xff] %vm79, %v78
    $region53: #{tpu_custom_call.1} parent=1 // pred_fallthru
      _
    %v81 = vld [vmem:[#allocation5] sm:$0xff]
    %v82 = vld [vmem:[#allocation5 + $0x8] sm:$0xff]
    %v83 = vld [vmem:[#allocation5 + $0x10] sm:$0xff]
    %v84 = vld [vmem:[#allocation5 + $0x18] sm:$0xff]
    %v85 = vld [vmem:[#allocation5 + $0x20] sm:$0xff]
    %v86 = vld [vmem:[#allocation5 + $0x28] sm:$0xff]
    %v87 = vld [vmem:[#allocation5 + $0x30] sm:$0xff]
    %v88 = vld [vmem:[#allocation5 + $0x38] sm:$0xff]
    %v89 = vld [vmem:[%s2] sm:$0xff]
    %v90 = vld [vmem:[%s2 + $0x8] sm:$0xff]
    %v91 = vld [vmem:[%s2 + $0x10] sm:$0xff]
    %v92 = vld [vmem:[%s2 + $0x18] sm:$0xff]
    %v93 = vld [vmem:[%s6] sm:$0x1]
    %v95 = vlaneseq
    %v96 = vshrl.u32 %v95, 7
    %v97 = vsub.s32 0, %v96
    %v98 = vrot.slane %v93, %v97
    %vm100 = vcmask 261120
    %v102 = vsel %vm100, %v81, 0
    %v105 = vsel %vm100, %v82, 0
    %v108 = vsel %vm100, %v83, 0
    %v111 = vsel %vm100, %v84, 0
    %v114 = vsel %vm100, %v85, 0
    %v117 = vsel %vm100, %v86, 0
    %v120 = vsel %vm100, %v87, 0
    %v123 = vsel %vm100, %v88, 0
    %125 = vmatprep.subr.mxu0 0.0
    %126 = vmatpush1.msra.mxu0 0.0
    %127 = vmatprep.subr.mxu0 0.0
    %128 = vmatpush1.msra.mxu0 0.0
    %129 = vmatprep.subr.mxu0 0.0
    %130 = vmatpush1.msra.mxu0 0.0
    %131 = vmatprep.subr.mxu0 0.0
    %132 = vmatpush1.msra.mxu0 0.0
    %133 = vmatprep.subr.mxu0 0.0
    %134 = vmatpush1.msra.mxu0 0.0
    %135 = vmatprep.subr.mxu0 0.0
    %136 = vmatpush1.msra.mxu0 0.0
    %137 = vmatprep.subr.mxu0 0.0
    %138 = vmatpush1.msra.mxu0 0.0
    %139 = vmatprep.subr.mxu0 0.0
    %140 = vmatpush1.msra.mxu0 0.0
    %141 = vmatprep.subr.mxu0 0.0
    %142 = vmatpush1.msra.mxu0 0.0
    %143 = vmatprep.subr.mxu0 0.0
    %144 = vmatpush1.msra.mxu0 0.0
    %145 = vmatprep.subr.mxu0 0.0
    %146 = vmatpush1.msra.mxu0 0.0
    %147 = vmatprep.subr.mxu0 0.0
    %148 = vmatpush1.msra.mxu0 0.0
    %149 = vmatprep.subr.mxu0 0.0
    %150 = vmatpush1.msra.mxu0 %v92
    %151 = vmatprep.subr.mxu0 0.0
    %152 = vmatpush1.msra.mxu0 %v91
    %153 = vmatprep.subr.mxu0 0.0
    %154 = vmatpush1.msra.mxu0 %v90
    %155 = vmatprep.subr.mxu0 0.0
    %156 = vmatpush1.msra.mxu0 %v89
    %157 = vmatprep.subr.mxu0 0.0
    %158 = vmatpush2.msra.mxu0 0.0
    %159 = vmatprep.subr.mxu0 0.0
    %160 = vmatpush2.msra.mxu0 0.0
    %161 = vmatprep.subr.mxu0 0.0
    %162 = vmatpush2.msra.mxu0 0.0
    %163 = vmatprep.subr.mxu0 0.0
    %164 = vmatpush2.msra.mxu0 0.0
    %165 = vmatprep.subr.mxu0 0.0
    %166 = vmatpush2.msra.mxu0 0.0
    %167 = vmatprep.subr.mxu0 0.0
    %168 = vmatpush2.msra.mxu0 0.0
    %169 = vmatprep.subr.mxu0 0.0
    %170 = vmatpush2.msra.mxu0 0.0
    %171 = vmatprep.subr.mxu0 0.0
    %172 = vmatpush2.msra.mxu0 0.0
    %173 = vmatprep.subr.mxu0 0.0
    %174 = vmatpush2.msra.mxu0 0.0
    %175 = vmatprep.subr.mxu0 0.0
    %176 = vmatpush2.msra.mxu0 0.0
    %177 = vmatprep.subr.mxu0 0.0
    %178 = vmatpush2.msra.mxu0 0.0
    %179 = vmatprep.subr.mxu0 0.0
    %180 = vmatpush2.msra.mxu0 0.0
    %181 = vmatprep.subr.mxu0 0.0
    %182 = vmatpush2.msra.mxu0 0.0
    %183 = vmatprep.subr.mxu0 0.0
    %184 = vmatpush2.msra.mxu0 0.0
    %185 = vmatprep.subr.mxu0 0.0
    %186 = vmatpush2.msra.mxu0 0.0
    %187 = vmatprep.subr.mxu0 0.0
    %188 = vmatpush2.msra.mxu0 0.0
    %189 = vmatprep.mubr.f32.mxu0 0.0
    %190 = vmatmul.mubr.f32.gmra.mxu0 %v102
    %v191 = vpop.f32.mrf.mxu0
    %v192 = vadd.f32 %v98, %v191
    %v193 = vpop.f32.mrf.mxu0
    %194 = vmatprep.mubr.f32.mxu0 0.0
    %195 = vmatmul.mubr.f32.gmra.mxu0 %v105
    %v196 = vpop.f32.mrf.mxu0
    %v197 = vadd.f32 %v98, %v196
    %v198 = vpop.f32.mrf.mxu0
    %199 = vmatprep.mubr.f32.mxu0 0.0
    %200 = vmatmul.mubr.f32.gmra.mxu0 %v108
    %v201 = vpop.f32.mrf.mxu0
    %v202 = vadd.f32 %v98, %v201
    %v203 = vpop.f32.mrf.mxu0
    %204 = vmatprep.mubr.f32.mxu0 0.0
    %205 = vmatmul.mubr.f32.gmra.mxu0 %v111
    %v206 = vpop.f32.mrf.mxu0
    %v207 = vadd.f32 %v98, %v206
    %v208 = vpop.f32.mrf.mxu0
    %209 = vmatprep.mubr.f32.mxu0 0.0
    %210 = vmatmul.mubr.f32.gmra.mxu0 %v114
    %v211 = vpop.f32.mrf.mxu0
    %v212 = vadd.f32 %v98, %v211
    %v213 = vpop.f32.mrf.mxu0
    %214 = vmatprep.mubr.f32.mxu0 0.0
    %215 = vmatmul.mubr.f32.gmra.mxu0 %v117
    %v216 = vpop.f32.mrf.mxu0
    %v217 = vadd.f32 %v98, %v216
    %v218 = vpop.f32.mrf.mxu0
    %219 = vmatprep.mubr.f32.mxu0 0.0
    %220 = vmatmul.mubr.f32.gmra.mxu0 %v120
    %v221 = vpop.f32.mrf.mxu0
    %v222 = vadd.f32 %v98, %v221
    %v223 = vpop.f32.mrf.mxu0
    %224 = vmatprep.mubr.f32.mxu0 0.0
    %225 = vmatmul.mubr.f32.gmra.mxu0 %v123
    %v226 = vpop.f32.mrf.mxu0
    %v227 = vadd.f32 %v98, %v226
    %v228 = vpop.f32.mrf.mxu0
    %229 = vdwg.mxu0
    %v230 = vmax.f32 %v192, 0.0
    %v231 = vmax.f32 %v197, 0.0
    %v232 = vmax.f32 %v202, 0.0
    %v233 = vmax.f32 %v207, 0.0
    %v234 = vmax.f32 %v212, 0.0
    %v235 = vmax.f32 %v217, 0.0
    %v236 = vmax.f32 %v222, 0.0
    %v237 = vmax.f32 %v227, 0.0
    %v238 = vld [vmem:[#allocation8] sm:$0xff]
    %v239 = vld [vmem:[#allocation8 + $0x8] sm:$0xff]
    %v240 = vld [vmem:[#allocation8 + $0x10] sm:$0xff]
    %v241 = vld [vmem:[#allocation8 + $0x18] sm:$0xff]
    %v242 = vld [vmem:[%s7] sm:$0x1]
    %v244 = vlaneseq
    %v245 = vshrl.u32 %v244, 7
    %v246 = vsub.s32 0, %v245
    %v247 = vrot.slane %v242, %v246
    %v250 = vsel %vm100, %v230, 0
    %v253 = vsel %vm100, %v231, 0
    %v256 = vsel %vm100, %v232, 0
    %v259 = vsel %vm100, %v233, 0
    %v262 = vsel %vm100, %v234, 0
    %v265 = vsel %vm100, %v235, 0
    %v268 = vsel %vm100, %v236, 0
    %v271 = vsel %vm100, %v237, 0
    %273 = vmatprep.subr.mxu0 0.0
    %274 = vmatpush1.msra.mxu0 0.0
    %275 = vmatprep.subr.mxu0 0.0
    %276 = vmatpush1.msra.mxu0 0.0
    %277 = vmatprep.subr.mxu0 0.0
    %278 = vmatpush1.msra.mxu0 0.0
    %279 = vmatprep.subr.mxu0 0.0
    %280 = vmatpush1.msra.mxu0 0.0
    %281 = vmatprep.subr.mxu0 0.0
    %282 = vmatpush1.msra.mxu0 0.0
    %283 = vmatprep.subr.mxu0 0.0
    %284 = vmatpush1.msra.mxu0 0.0
    %285 = vmatprep.subr.mxu0 0.0
    %286 = vmatpush1.msra.mxu0 0.0
    %287 = vmatprep.subr.mxu0 0.0
    %288 = vmatpush1.msra.mxu0 0.0
    %289 = vmatprep.subr.mxu0 0.0
    %290 = vmatpush1.msra.mxu0 0.0
    %291 = vmatprep.subr.mxu0 0.0
    %292 = vmatpush1.msra.mxu0 0.0
    %293 = vmatprep.subr.mxu0 0.0
    %294 = vmatpush1.msra.mxu0 0.0
    %295 = vmatprep.subr.mxu0 0.0
    %296 = vmatpush1.msra.mxu0 0.0
    %297 = vmatprep.subr.mxu0 0.0
    %298 = vmatpush1.msra.mxu0 %v241
    %299 = vmatprep.subr.mxu0 0.0
    %300 = vmatpush1.msra.mxu0 %v240
    %301 = vmatprep.subr.mxu0 0.0
    %302 = vmatpush1.msra.mxu0 %v239
    %303 = vmatprep.subr.mxu0 0.0
    %304 = vmatpush1.msra.mxu0 %v238
    %305 = vmatprep.subr.mxu0 0.0
    %306 = vmatpush2.msra.mxu0 0.0
    %307 = vmatprep.subr.mxu0 0.0
    %308 = vmatpush2.msra.mxu0 0.0
    %309 = vmatprep.subr.mxu0 0.0
    %310 = vmatpush2.msra.mxu0 0.0
    %311 = vmatprep.subr.mxu0 0.0
    %312 = vmatpush2.msra.mxu0 0.0
    %313 = vmatprep.subr.mxu0 0.0
    %314 = vmatpush2.msra.mxu0 0.0
    %315 = vmatprep.subr.mxu0 0.0
    %316 = vmatpush2.msra.mxu0 0.0
    %317 = vmatprep.subr.mxu0 0.0
    %318 = vmatpush2.msra.mxu0 0.0
    %319 = vmatprep.subr.mxu0 0.0
    %320 = vmatpush2.msra.mxu0 0.0
    %321 = vmatprep.subr.mxu0 0.0
    %322 = vmatpush2.msra.mxu0 0.0
    %323 = vmatprep.subr.mxu0 0.0
    %324 = vmatpush2.msra.mxu0 0.0
    %325 = vmatprep.subr.mxu0 0.0
    %326 = vmatpush2.msra.mxu0 0.0
    %327 = vmatprep.subr.mxu0 0.0
    %328 = vmatpush2.msra.mxu0 0.0
    %329 = vmatprep.subr.mxu0 0.0
    %330 = vmatpush2.msra.mxu0 0.0
    %331 = vmatprep.subr.mxu0 0.0
    %332 = vmatpush2.msra.mxu0 0.0
    %333 = vmatprep.subr.mxu0 0.0
    %334 = vmatpush2.msra.mxu0 0.0
    %335 = vmatprep.subr.mxu0 0.0
    %336 = vmatpush2.msra.mxu0 0.0
    %337 = vmatprep.mubr.f32.mxu0 0.0
    %338 = vmatmul.mubr.f32.gmra.mxu0 %v250
    %v339 = vpop.f32.mrf.mxu0
    %v340 = vadd.f32 %v247, %v339
    %v341 = vpop.f32.mrf.mxu0
    %342 = vmatprep.mubr.f32.mxu0 0.0
    %343 = vmatmul.mubr.f32.gmra.mxu0 %v253
    %v344 = vpop.f32.mrf.mxu0
    %v345 = vadd.f32 %v247, %v344
    %v346 = vpop.f32.mrf.mxu0
    %347 = vmatprep.mubr.f32.mxu0 0.0
    %348 = vmatmul.mubr.f32.gmra.mxu0 %v256
    %v349 = vpop.f32.mrf.mxu0
    %v350 = vadd.f32 %v247, %v349
    %v351 = vpop.f32.mrf.mxu0
    %352 = vmatprep.mubr.f32.mxu0 0.0
    %353 = vmatmul.mubr.f32.gmra.mxu0 %v259
    %v354 = vpop.f32.mrf.mxu0
    %v355 = vadd.f32 %v247, %v354
    %v356 = vpop.f32.mrf.mxu0
    %357 = vmatprep.mubr.f32.mxu0 0.0
    %358 = vmatmul.mubr.f32.gmra.mxu0 %v262
    %v359 = vpop.f32.mrf.mxu0
    %v360 = vadd.f32 %v247, %v359
    %v361 = vpop.f32.mrf.mxu0
    %362 = vmatprep.mubr.f32.mxu0 0.0
    %363 = vmatmul.mubr.f32.gmra.mxu0 %v265
    %v364 = vpop.f32.mrf.mxu0
    %v365 = vadd.f32 %v247, %v364
    %v366 = vpop.f32.mrf.mxu0
    %367 = vmatprep.mubr.f32.mxu0 0.0
    %368 = vmatmul.mubr.f32.gmra.mxu0 %v268
    %v369 = vpop.f32.mrf.mxu0
    %v370 = vadd.f32 %v247, %v369
    %v371 = vpop.f32.mrf.mxu0
    %372 = vmatprep.mubr.f32.mxu0 0.0
    %373 = vmatmul.mubr.f32.gmra.mxu0 %v271
    %v374 = vpop.f32.mrf.mxu0
    %v375 = vadd.f32 %v247, %v374
    %v376 = vpop.f32.mrf.mxu0
    %377 = vdwg.mxu0
    %378 = vst [vmem:[#allocation3] sm:$0xff] %v340
    %379 = vst [vmem:[#allocation3 + $0x8] sm:$0xff] %v345
    %380 = vst [vmem:[#allocation3 + $0x10] sm:$0xff] %v350
    %381 = vst [vmem:[#allocation3 + $0x18] sm:$0xff] %v355
    %382 = vst [vmem:[#allocation3 + $0x20] sm:$0xff] %v360
    %383 = vst [vmem:[#allocation3 + $0x28] sm:$0xff] %v365
    %384 = vst [vmem:[#allocation3 + $0x30] sm:$0xff] %v370
    %385 = vst [vmem:[#allocation3 + $0x38] sm:$0xff] %v375
    %v386 = vld [vmem:[#allocation10] sm:$0xff]
    %v387 = vld [vmem:[#allocation10 + $0x8] sm:$0xff]
    %v388 = vld [vmem:[#allocation10 + $0x10] sm:$0xff]
    %v389 = vld [vmem:[#allocation10 + $0x18] sm:$0xff]
    %v390 = vld [vmem:[#allocation2] sm:$0xff]
    %v391 = vld [vmem:[#allocation3] sm:$0xff]
    %v393 = vsel %vm100, %v390, 0
    %395 = vmatprep.subr.mxu0 0.0
    %396 = vmatpush1.msra.mxu0 0.0
    %397 = vmatprep.subr.mxu0 0.0
    %398 = vmatpush1.msra.mxu0 0.0
    %399 = vmatprep.subr.mxu0 0.0
    %400 = vmatpush1.msra.mxu0 0.0
    %401 = vmatprep.subr.mxu0 0.0
    %402 = vmatpush1.msra.mxu0 0.0
    %403 = vmatprep.subr.mxu0 0.0
    %404 = vmatpush1.msra.mxu0 0.0
    %405 = vmatprep.subr.mxu0 0.0
    %406 = vmatpush1.msra.mxu0 0.0
    %407 = vmatprep.subr.mxu0 0.0
    %408 = vmatpush1.msra.mxu0 0.0
    %409 = vmatprep.subr.mxu0 0.0
    %410 = vmatpush1.msra.mxu0 0.0
    %411 = vmatprep.subr.mxu0 0.0
    %412 = vmatpush1.msra.mxu0 0.0
    %413 = vmatprep.subr.mxu0 0.0
    %414 = vmatpush1.msra.mxu0 0.0
    %415 = vmatprep.subr.mxu0 0.0
    %416 = vmatpush1.msra.mxu0 0.0
    %417 = vmatprep.subr.mxu0 0.0
    %418 = vmatpush1.msra.mxu0 0.0
    %419 = vmatprep.subr.mxu0 0.0
    %420 = vmatpush1.msra.mxu0 %v389
    %421 = vmatprep.subr.mxu0 0.0
    %422 = vmatpush1.msra.mxu0 %v388
    %423 = vmatprep.subr.mxu0 0.0
    %424 = vmatpush1.msra.mxu0 %v387
    %425 = vmatprep.subr.mxu0 0.0
    %426 = vmatpush1.msra.mxu0 %v386
    %427 = vmatprep.subr.mxu0 0.0
    %428 = vmatpush2.msra.mxu0 0.0
    %429 = vmatprep.subr.mxu0 0.0
    %430 = vmatpush2.msra.mxu0 0.0
    %431 = vmatprep.subr.mxu0 0.0
    %432 = vmatpush2.msra.mxu0 0.0
    %433 = vmatprep.subr.mxu0 0.0
    %434 = vmatpush2.msra.mxu0 0.0
    %435 = vmatprep.subr.mxu0 0.0
    %436 = vmatpush2.msra.mxu0 0.0
    %437 = vmatprep.subr.mxu0 0.0
    %438 = vmatpush2.msra.mxu0 0.0
    %439 = vmatprep.subr.mxu0 0.0
    %440 = vmatpush2.msra.mxu0 0.0
    %441 = vmatprep.subr.mxu0 0.0
    %442 = vmatpush2.msra.mxu0 0.0
    %443 = vmatprep.subr.mxu0 0.0
    %444 = vmatpush2.msra.mxu0 0.0
    %445 = vmatprep.subr.mxu0 0.0
    %446 = vmatpush2.msra.mxu0 0.0
    %447 = vmatprep.subr.mxu0 0.0
    %448 = vmatpush2.msra.mxu0 0.0
    %449 = vmatprep.subr.mxu0 0.0
    %450 = vmatpush2.msra.mxu0 0.0
    %451 = vmatprep.subr.mxu0 0.0
    %452 = vmatpush2.msra.mxu0 0.0
    %453 = vmatprep.subr.mxu0 0.0
    %454 = vmatpush2.msra.mxu0 0.0
    %455 = vmatprep.subr.mxu0 0.0
    %456 = vmatpush2.msra.mxu0 0.0
    %457 = vmatprep.subr.mxu0 0.0
    %458 = vmatpush2.msra.mxu0 0.0
    %459 = vmatprep.mubr.f32.mxu0 0.0
    %460 = vmatmul.mubr.f32.gmra.mxu0 %v393
    %v461 = vpop.f32.mrf.mxu0
    %v462 = vadd.f32 0.0, %v461
    %v463 = vpop.f32.mrf.mxu0
    %464 = vdwg.mxu0
    %v465 = vadd.f32 %v391, %v462
    %v466 = vxor.u32 %v465, 2147483648
    %v467 = vmul.f32 %v466, 1.442695
    %v468 = vpow.pop %v467
    %v469 = vadd.f32 %v468, 1.0
    %v470 = vrcp.pop %v469
    %v471 = vmul.f32 1.0, %v470
    %473 = vrot.lane.b32.xlu0 %v465, 32
    %v474 = vpop.permute.xlu0 %473
    %v476 = vmul.f32 %v471, %v474
    %478 = vrot.lane.b32.xlu0 %v476, 64
    %v479 = vpop.permute.xlu0 %478
    %v481 = vadd.f32 %v465, %v479
    %v482 = vtanh.pop %v481
    %v483 = vsub.f32 1.0, %v471
    %485 = vrot.lane.b32.xlu0 %v482, 96
    %v486 = vpop.permute.xlu0 %485
    %v488 = vmul.f32 %v483, %v486
    %489 = vrot.lane.b32.xlu0 %v390, 32
    %v490 = vpop.permute.xlu0 %489
    %v492 = vmul.f32 %v471, %v490
    %v493 = vadd.f32 %v488, %v492
    %495 = vrot.lane.b32.xlu0 %v493, 96
    %v496 = vpop.permute.xlu0 %495
    %498 = vst.msk [vmem:[#allocation2] sm:$0xff] %vm100, %v496
    %499 = vst.msk [vmem:[#allocation4] sm:$0xff] %vm100, %v496
    %v500 = vld [vmem:[#allocation2] sm:$0xff]
    %s501 = scalar_lea.vmem [#allocation3], 8
    %v502 = vld [vmem:[%s501] sm:$0xff]
    %v504 = vsel %vm100, %v500, 0
    %506 = vmatprep.subr.mxu0 0.0
    %507 = vmatpush1.msra.mxu0 0.0
    %508 = vmatprep.subr.mxu0 0.0
    %509 = vmatpush1.msra.mxu0 0.0
    %510 = vmatprep.subr.mxu0 0.0
    %511 = vmatpush1.msra.mxu0 0.0
    %512 = vmatprep.subr.mxu0 0.0
    %513 = vmatpush1.msra.mxu0 0.0
    %514 = vmatprep.subr.mxu0 0.0
    %515 = vmatpush1.msra.mxu0 0.0
    %516 = vmatprep.subr.mxu0 0.0
    %517 = vmatpush1.msra.mxu0 0.0
    %518 = vmatprep.subr.mxu0 0.0
    %519 = vmatpush1.msra.mxu0 0.0
    %520 = vmatprep.subr.mxu0 0.0
    %521 = vmatpush1.msra.mxu0 0.0
    %522 = vmatprep.subr.mxu0 0.0
    %523 = vmatpush1.msra.mxu0 0.0
    %524 = vmatprep.subr.mxu0 0.0
    %525 = vmatpush1.msra.mxu0 0.0
    %526 = vmatprep.subr.mxu0 0.0
    %527 = vmatpush1.msra.mxu0 0.0
    %528 = vmatprep.subr.mxu0 0.0
    %529 = vmatpush1.msra.mxu0 0.0
    %530 = vmatprep.subr.mxu0 0.0
    %531 = vmatpush1.msra.mxu0 %v389
    %532 = vmatprep.subr.mxu0 0.0
    %533 = vmatpush1.msra.mxu0 %v388
    %534 = vmatprep.subr.mxu0 0.0
    %535 = vmatpush1.msra.mxu0 %v387
    %536 = vmatprep.subr.mxu0 0.0
    %537 = vmatpush1.msra.mxu0 %v386
    %538 = vmatprep.subr.mxu0 0.0
    %539 = vmatpush2.msra.mxu0 0.0
    %540 = vmatprep.subr.mxu0 0.0
    %541 = vmatpush2.msra.mxu0 0.0
    %542 = vmatprep.subr.mxu0 0.0
    %543 = vmatpush2.msra.mxu0 0.0
    %544 = vmatprep.subr.mxu0 0.0
    %545 = vmatpush2.msra.mxu0 0.0
    %546 = vmatprep.subr.mxu0 0.0
    %547 = vmatpush2.msra.mxu0 0.0
    %548 = vmatprep.subr.mxu0 0.0
    %549 = vmatpush2.msra.mxu0 0.0
    %550 = vmatprep.subr.mxu0 0.0
    %551 = vmatpush2.msra.mxu0 0.0
    %552 = vmatprep.subr.mxu0 0.0
    %553 = vmatpush2.msra.mxu0 0.0
    %554 = vmatprep.subr.mxu0 0.0
    %555 = vmatpush2.msra.mxu0 0.0
    %556 = vmatprep.subr.mxu0 0.0
    %557 = vmatpush2.msra.mxu0 0.0
    %558 = vmatprep.subr.mxu0 0.0
    %559 = vmatpush2.msra.mxu0 0.0
    %560 = vmatprep.subr.mxu0 0.0
    %561 = vmatpush2.msra.mxu0 0.0
    %562 = vmatprep.subr.mxu0 0.0
    %563 = vmatpush2.msra.mxu0 0.0
    %564 = vmatprep.subr.mxu0 0.0
    %565 = vmatpush2.msra.mxu0 0.0
    %566 = vmatprep.subr.mxu0 0.0
    %567 = vmatpush2.msra.mxu0 0.0
    %568 = vmatprep.subr.mxu0 0.0
    %569 = vmatpush2.msra.mxu0 0.0
    %570 = vmatprep.mubr.f32.mxu0 0.0
    %571 = vmatmul.mubr.f32.gmra.mxu0 %v504
    %v572 = vpop.f32.mrf.mxu0
    %v573 = vadd.f32 0.0, %v572
    %v574 = vpop.f32.mrf.mxu0
    %575 = vdwg.mxu0
    %v576 = vadd.f32 %v502, %v573
    %v577 = vxor.u32 %v576, 2147483648
    %v578 = vmul.f32 %v577, 1.442695
    %v579 = vpow.pop %v578
    %v580 = vadd.f32 %v579, 1.0
    %v581 = vrcp.pop %v580
    %v582 = vmul.f32 1.0, %v581
    %584 = vrot.lane.b32.xlu0 %v576, 32
    %v585 = vpop.permute.xlu0 %584
    %v587 = vmul.f32 %v582, %v585
    %589 = vrot.lane.b32.xlu0 %v587, 64
    %v590 = vpop.permute.xlu0 %589
    %v592 = vadd.f32 %v576, %v590
    %v593 = vtanh.pop %v592
    %v594 = vsub.f32 1.0, %v582
    %596 = vrot.lane.b32.xlu0 %v593, 96
    %v597 = vpop.permute.xlu0 %596
    %v599 = vmul.f32 %v594, %v597
    %600 = vrot.lane.b32.xlu0 %v500, 32
    %v601 = vpop.permute.xlu0 %600
    %v603 = vmul.f32 %v582, %v601
    %v604 = vadd.f32 %v599, %v603
    %606 = vrot.lane.b32.xlu0 %v604, 96
    %v607 = vpop.permute.xlu0 %606
    %609 = vst.msk [vmem:[#allocation2] sm:$0xff] %vm100, %v607
    %s610 = scalar_lea.vmem [#allocation4], 8
    %611 = vst.msk [vmem:[%s610] sm:$0xff] %vm100, %v607
    %v612 = vld [vmem:[#allocation2] sm:$0xff]
    %s613 = scalar_lea.vmem [#allocation3], 16
    %v614 = vld [vmem:[%s613] sm:$0xff]
    %v616 = vsel %vm100, %v612, 0
    %618 = vmatprep.subr.mxu0 0.0
    %619 = vmatpush1.msra.mxu0 0.0
    %620 = vmatprep.subr.mxu0 0.0
    %621 = vmatpush1.msra.mxu0 0.0
    %622 = vmatprep.subr.mxu0 0.0
    %623 = vmatpush1.msra.mxu0 0.0
    %624 = vmatprep.subr.mxu0 0.0
    %625 = vmatpush1.msra.mxu0 0.0
    %626 = vmatprep.subr.mxu0 0.0
    %627 = vmatpush1.msra.mxu0 0.0
    %628 = vmatprep.subr.mxu0 0.0
    %629 = vmatpush1.msra.mxu0 0.0
    %630 = vmatprep.subr.mxu0 0.0
    %631 = vmatpush1.msra.mxu0 0.0
    %632 = vmatprep.subr.mxu0 0.0
    %633 = vmatpush1.msra.mxu0 0.0
    %634 = vmatprep.subr.mxu0 0.0
    %635 = vmatpush1.msra.mxu0 0.0
    %636 = vmatprep.subr.mxu0 0.0
    %637 = vmatpush1.msra.mxu0 0.0
    %638 = vmatprep.subr.mxu0 0.0
    %639 = vmatpush1.msra.mxu0 0.0
    %640 = vmatprep.subr.mxu0 0.0
    %641 = vmatpush1.msra.mxu0 0.0
    %642 = vmatprep.subr.mxu0 0.0
    %643 = vmatpush1.msra.mxu0 %v389
    %644 = vmatprep.subr.mxu0 0.0
    %645 = vmatpush1.msra.mxu0 %v388
    %646 = vmatprep.subr.mxu0 0.0
    %647 = vmatpush1.msra.mxu0 %v387
    %648 = vmatprep.subr.mxu0 0.0
    %649 = vmatpush1.msra.mxu0 %v386
    %650 = vmatprep.subr.mxu0 0.0
    %651 = vmatpush2.msra.mxu0 0.0
    %652 = vmatprep.subr.mxu0 0.0
    %653 = vmatpush2.msra.mxu0 0.0
    %654 = vmatprep.subr.mxu0 0.0
    %655 = vmatpush2.msra.mxu0 0.0
    %656 = vmatprep.subr.mxu0 0.0
    %657 = vmatpush2.msra.mxu0 0.0
    %658 = vmatprep.subr.mxu0 0.0
    %659 = vmatpush2.msra.mxu0 0.0
    %660 = vmatprep.subr.mxu0 0.0
    %661 = vmatpush2.msra.mxu0 0.0
    %662 = vmatprep.subr.mxu0 0.0
    %663 = vmatpush2.msra.mxu0 0.0
    %664 = vmatprep.subr.mxu0 0.0
    %665 = vmatpush2.msra.mxu0 0.0
    %666 = vmatprep.subr.mxu0 0.0
    %667 = vmatpush2.msra.mxu0 0.0
    %668 = vmatprep.subr.mxu0 0.0
    %669 = vmatpush2.msra.mxu0 0.0
    %670 = vmatprep.subr.mxu0 0.0
    %671 = vmatpush2.msra.mxu0 0.0
    %672 = vmatprep.subr.mxu0 0.0
    %673 = vmatpush2.msra.mxu0 0.0
    %674 = vmatprep.subr.mxu0 0.0
    %675 = vmatpush2.msra.mxu0 0.0
    %676 = vmatprep.subr.mxu0 0.0
    %677 = vmatpush2.msra.mxu0 0.0
    %678 = vmatprep.subr.mxu0 0.0
    %679 = vmatpush2.msra.mxu0 0.0
    %680 = vmatprep.subr.mxu0 0.0
    %681 = vmatpush2.msra.mxu0 0.0
    %682 = vmatprep.mubr.f32.mxu0 0.0
    %683 = vmatmul.mubr.f32.gmra.mxu0 %v616
    %v684 = vpop.f32.mrf.mxu0
    %v685 = vadd.f32 0.0, %v684
    %v686 = vpop.f32.mrf.mxu0
    %687 = vdwg.mxu0
    %v688 = vadd.f32 %v614, %v685
    %v689 = vxor.u32 %v688, 2147483648
    %v690 = vmul.f32 %v689, 1.442695
    %v691 = vpow.pop %v690
    %v692 = vadd.f32 %v691, 1.0
    %v693 = vrcp.pop %v692
    %v694 = vmul.f32 1.0, %v693
    %696 = vrot.lane.b32.xlu0 %v688, 32
    %v697 = vpop.permute.xlu0 %696
    %v699 = vmul.f32 %v694, %v697
    %701 = vrot.lane.b32.xlu0 %v699, 64
    %v702 = vpop.permute.xlu0 %701
    %v704 = vadd.f32 %v688, %v702
    %v705 = vtanh.pop %v704
    %v706 = vsub.f32 1.0, %v694
    %708 = vrot.lane.b32.xlu0 %v705, 96
    %v709 = vpop.permute.xlu0 %708
    %v711 = vmul.f32 %v706, %v709
    %712 = vrot.lane.b32.xlu0 %v612, 32
    %v713 = vpop.permute.xlu0 %712
    %v715 = vmul.f32 %v694, %v713
    %v716 = vadd.f32 %v711, %v715
    %718 = vrot.lane.b32.xlu0 %v716, 96
    %v719 = vpop.permute.xlu0 %718
    %721 = vst.msk [vmem:[#allocation2] sm:$0xff] %vm100, %v719
    %s722 = scalar_lea.vmem [#allocation4], 16
    %723 = vst.msk [vmem:[%s722] sm:$0xff] %vm100, %v719
    %v724 = vld [vmem:[#allocation2] sm:$0xff]
    %s725 = scalar_lea.vmem [#allocation3], 24
    %v726 = vld [vmem:[%s725] sm:$0xff]
    %v728 = vsel %vm100, %v724, 0
    %730 = vmatprep.subr.mxu0 0.0
    %731 = vmatpush1.msra.mxu0 0.0
    %732 = vmatprep.subr.mxu0 0.0
    %733 = vmatpush1.msra.mxu0 0.0
    %734 = vmatprep.subr.mxu0 0.0
    %735 = vmatpush1.msra.mxu0 0.0
    %736 = vmatprep.subr.mxu0 0.0
    %737 = vmatpush1.msra.mxu0 0.0
    %738 = vmatprep.subr.mxu0 0.0
    %739 = vmatpush1.msra.mxu0 0.0
    %740 = vmatprep.subr.mxu0 0.0
    %741 = vmatpush1.msra.mxu0 0.0
    %742 = vmatprep.subr.mxu0 0.0
    %743 = vmatpush1.msra.mxu0 0.0
    %744 = vmatprep.subr.mxu0 0.0
    %745 = vmatpush1.msra.mxu0 0.0
    %746 = vmatprep.subr.mxu0 0.0
    %747 = vmatpush1.msra.mxu0 0.0
    %748 = vmatprep.subr.mxu0 0.0
    %749 = vmatpush1.msra.mxu0 0.0
    %750 = vmatprep.subr.mxu0 0.0
    %751 = vmatpush1.msra.mxu0 0.0
    %752 = vmatprep.subr.mxu0 0.0
    %753 = vmatpush1.msra.mxu0 0.0
    %754 = vmatprep.subr.mxu0 0.0
    %755 = vmatpush1.msra.mxu0 %v389
    %756 = vmatprep.subr.mxu0 0.0
    %757 = vmatpush1.msra.mxu0 %v388
    %758 = vmatprep.subr.mxu0 0.0
    %759 = vmatpush1.msra.mxu0 %v387
    %760 = vmatprep.subr.mxu0 0.0
    %761 = vmatpush1.msra.mxu0 %v386
    %762 = vmatprep.subr.mxu0 0.0
    %763 = vmatpush2.msra.mxu0 0.0
    %764 = vmatprep.subr.mxu0 0.0
    %765 = vmatpush2.msra.mxu0 0.0
    %766 = vmatprep.subr.mxu0 0.0
    %767 = vmatpush2.msra.mxu0 0.0
    %768 = vmatprep.subr.mxu0 0.0
    %769 = vmatpush2.msra.mxu0 0.0
    %770 = vmatprep.subr.mxu0 0.0
    %771 = vmatpush2.msra.mxu0 0.0
    %772 = vmatprep.subr.mxu0 0.0
    %773 = vmatpush2.msra.mxu0 0.0
    %774 = vmatprep.subr.mxu0 0.0
    %775 = vmatpush2.msra.mxu0 0.0
    %776 = vmatprep.subr.mxu0 0.0
    %777 = vmatpush2.msra.mxu0 0.0
    %778 = vmatprep.subr.mxu0 0.0
    %779 = vmatpush2.msra.mxu0 0.0
    %780 = vmatprep.subr.mxu0 0.0
    %781 = vmatpush2.msra.mxu0 0.0
    %782 = vmatprep.subr.mxu0 0.0
    %783 = vmatpush2.msra.mxu0 0.0
    %784 = vmatprep.subr.mxu0 0.0
    %785 = vmatpush2.msra.mxu0 0.0
    %786 = vmatprep.subr.mxu0 0.0
    %787 = vmatpush2.msra.mxu0 0.0
    %788 = vmatprep.subr.mxu0 0.0
    %789 = vmatpush2.msra.mxu0 0.0
    %790 = vmatprep.subr.mxu0 0.0
    %791 = vmatpush2.msra.mxu0 0.0
    %792 = vmatprep.subr.mxu0 0.0
    %793 = vmatpush2.msra.mxu0 0.0
    %794 = vmatprep.mubr.f32.mxu0 0.0
    %795 = vmatmul.mubr.f32.gmra.mxu0 %v728
    %v796 = vpop.f32.mrf.mxu0
    %v797 = vadd.f32 0.0, %v796
    %v798 = vpop.f32.mrf.mxu0
    %799 = vdwg.mxu0
    %v800 = vadd.f32 %v726, %v797
    %v801 = vxor.u32 %v800, 2147483648
    %v802 = vmul.f32 %v801, 1.442695
    %v803 = vpow.pop %v802
    %v804 = vadd.f32 %v803, 1.0
    %v805 = vrcp.pop %v804
    %v806 = vmul.f32 1.0, %v805
    %808 = vrot.lane.b32.xlu0 %v800, 32
    %v809 = vpop.permute.xlu0 %808
    %v811 = vmul.f32 %v806, %v809
    %813 = vrot.lane.b32.xlu0 %v811, 64
    %v814 = vpop.permute.xlu0 %813
    %v816 = vadd.f32 %v800, %v814
    %v817 = vtanh.pop %v816
    %v818 = vsub.f32 1.0, %v806
    %820 = vrot.lane.b32.xlu0 %v817, 96
    %v821 = vpop.permute.xlu0 %820
    %v823 = vmul.f32 %v818, %v821
    %824 = vrot.lane.b32.xlu0 %v724, 32
    %v825 = vpop.permute.xlu0 %824
    %v827 = vmul.f32 %v806, %v825
    %v828 = vadd.f32 %v823, %v827
    %830 = vrot.lane.b32.xlu0 %v828, 96
    %v831 = vpop.permute.xlu0 %830
    %833 = vst.msk [vmem:[#allocation2] sm:$0xff] %vm100, %v831
    %s834 = scalar_lea.vmem [#allocation4], 24
    %835 = vst.msk [vmem:[%s834] sm:$0xff] %vm100, %v831
    %v836 = vld [vmem:[#allocation2] sm:$0xff]
    %s837 = scalar_lea.vmem [#allocation3], 32
    %v838 = vld [vmem:[%s837] sm:$0xff]
    %v840 = vsel %vm100, %v836, 0
    %842 = vmatprep.subr.mxu0 0.0
    %843 = vmatpush1.msra.mxu0 0.0
    %844 = vmatprep.subr.mxu0 0.0
    %845 = vmatpush1.msra.mxu0 0.0
    %846 = vmatprep.subr.mxu0 0.0
    %847 = vmatpush1.msra.mxu0 0.0
    %848 = vmatprep.subr.mxu0 0.0
    %849 = vmatpush1.msra.mxu0 0.0
    %850 = vmatprep.subr.mxu0 0.0
    %851 = vmatpush1.msra.mxu0 0.0
    %852 = vmatprep.subr.mxu0 0.0
    %853 = vmatpush1.msra.mxu0 0.0
    %854 = vmatprep.subr.mxu0 0.0
    %855 = vmatpush1.msra.mxu0 0.0
    %856 = vmatprep.subr.mxu0 0.0
    %857 = vmatpush1.msra.mxu0 0.0
    %858 = vmatprep.subr.mxu0 0.0
    %859 = vmatpush1.msra.mxu0 0.0
    %860 = vmatprep.subr.mxu0 0.0
    %861 = vmatpush1.msra.mxu0 0.0
    %862 = vmatprep.subr.mxu0 0.0
    %863 = vmatpush1.msra.mxu0 0.0
    %864 = vmatprep.subr.mxu0 0.0
    %865 = vmatpush1.msra.mxu0 0.0
    %866 = vmatprep.subr.mxu0 0.0
    %867 = vmatpush1.msra.mxu0 %v389
    %868 = vmatprep.subr.mxu0 0.0
    %869 = vmatpush1.msra.mxu0 %v388
    %870 = vmatprep.subr.mxu0 0.0
    %871 = vmatpush1.msra.mxu0 %v387
    %872 = vmatprep.subr.mxu0 0.0
    %873 = vmatpush1.msra.mxu0 %v386
    %874 = vmatprep.subr.mxu0 0.0
    %875 = vmatpush2.msra.mxu0 0.0
    %876 = vmatprep.subr.mxu0 0.0
    %877 = vmatpush2.msra.mxu0 0.0
    %878 = vmatprep.subr.mxu0 0.0
    %879 = vmatpush2.msra.mxu0 0.0
    %880 = vmatprep.subr.mxu0 0.0
    %881 = vmatpush2.msra.mxu0 0.0
    %882 = vmatprep.subr.mxu0 0.0
    %883 = vmatpush2.msra.mxu0 0.0
    %884 = vmatprep.subr.mxu0 0.0
    %885 = vmatpush2.msra.mxu0 0.0
    %886 = vmatprep.subr.mxu0 0.0
    %887 = vmatpush2.msra.mxu0 0.0
    %888 = vmatprep.subr.mxu0 0.0
    %889 = vmatpush2.msra.mxu0 0.0
    %890 = vmatprep.subr.mxu0 0.0
    %891 = vmatpush2.msra.mxu0 0.0
    %892 = vmatprep.subr.mxu0 0.0
    %893 = vmatpush2.msra.mxu0 0.0
    %894 = vmatprep.subr.mxu0 0.0
    %895 = vmatpush2.msra.mxu0 0.0
    %896 = vmatprep.subr.mxu0 0.0
    %897 = vmatpush2.msra.mxu0 0.0
    %898 = vmatprep.subr.mxu0 0.0
    %899 = vmatpush2.msra.mxu0 0.0
    %900 = vmatprep.subr.mxu0 0.0
    %901 = vmatpush2.msra.mxu0 0.0
    %902 = vmatprep.subr.mxu0 0.0
    %903 = vmatpush2.msra.mxu0 0.0
    %904 = vmatprep.subr.mxu0 0.0
    %905 = vmatpush2.msra.mxu0 0.0
    %906 = vmatprep.mubr.f32.mxu0 0.0
    %907 = vmatmul.mubr.f32.gmra.mxu0 %v840
    %v908 = vpop.f32.mrf.mxu0
    %v909 = vadd.f32 0.0, %v908
    %v910 = vpop.f32.mrf.mxu0
    %911 = vdwg.mxu0
    %v912 = vadd.f32 %v838, %v909
    %v913 = vxor.u32 %v912, 2147483648
    %v914 = vmul.f32 %v913, 1.442695
    %v915 = vpow.pop %v914
    %v916 = vadd.f32 %v915, 1.0
    %v917 = vrcp.pop %v916
    %v918 = vmul.f32 1.0, %v917
    %920 = vrot.lane.b32.xlu0 %v912, 32
    %v921 = vpop.permute.xlu0 %920
    %v923 = vmul.f32 %v918, %v921
    %925 = vrot.lane.b32.xlu0 %v923, 64
    %v926 = vpop.permute.xlu0 %925
    %v928 = vadd.f32 %v912, %v926
    %v929 = vtanh.pop %v928
    %v930 = vsub.f32 1.0, %v918
    %932 = vrot.lane.b32.xlu0 %v929, 96
    %v933 = vpop.permute.xlu0 %932
    %v935 = vmul.f32 %v930, %v933
    %936 = vrot.lane.b32.xlu0 %v836, 32
    %v937 = vpop.permute.xlu0 %936
    %v939 = vmul.f32 %v918, %v937
    %v940 = vadd.f32 %v935, %v939
    %942 = vrot.lane.b32.xlu0 %v940, 96
    %v943 = vpop.permute.xlu0 %942
    %945 = vst.msk [vmem:[#allocation2] sm:$0xff] %vm100, %v943
    %s946 = scalar_lea.vmem [#allocation4], 32
    %947 = vst.msk [vmem:[%s946] sm:$0xff] %vm100, %v943
    %v948 = vld [vmem:[#allocation2] sm:$0xff]
    %s949 = scalar_lea.vmem [#allocation3], 40
    %v950 = vld [vmem:[%s949] sm:$0xff]
    %v952 = vsel %vm100, %v948, 0
    %954 = vmatprep.subr.mxu0 0.0
    %955 = vmatpush1.msra.mxu0 0.0
    %956 = vmatprep.subr.mxu0 0.0
    %957 = vmatpush1.msra.mxu0 0.0
    %958 = vmatprep.subr.mxu0 0.0
    %959 = vmatpush1.msra.mxu0 0.0
    %960 = vmatprep.subr.mxu0 0.0
    %961 = vmatpush1.msra.mxu0 0.0
    %962 = vmatprep.subr.mxu0 0.0
    %963 = vmatpush1.msra.mxu0 0.0
    %964 = vmatprep.subr.mxu0 0.0
    %965 = vmatpush1.msra.mxu0 0.0
    %966 = vmatprep.subr.mxu0 0.0
    %967 = vmatpush1.msra.mxu0 0.0
    %968 = vmatprep.subr.mxu0 0.0
    %969 = vmatpush1.msra.mxu0 0.0
    %970 = vmatprep.subr.mxu0 0.0
    %971 = vmatpush1.msra.mxu0 0.0
    %972 = vmatprep.subr.mxu0 0.0
    %973 = vmatpush1.msra.mxu0 0.0
    %974 = vmatprep.subr.mxu0 0.0
    %975 = vmatpush1.msra.mxu0 0.0
    %976 = vmatprep.subr.mxu0 0.0
    %977 = vmatpush1.msra.mxu0 0.0
    %978 = vmatprep.subr.mxu0 0.0
    %979 = vmatpush1.msra.mxu0 %v389
    %980 = vmatprep.subr.mxu0 0.0
    %981 = vmatpush1.msra.mxu0 %v388
    %982 = vmatprep.subr.mxu0 0.0
    %983 = vmatpush1.msra.mxu0 %v387
    %984 = vmatprep.subr.mxu0 0.0
    %985 = vmatpush1.msra.mxu0 %v386
    %986 = vmatprep.subr.mxu0 0.0
    %987 = vmatpush2.msra.mxu0 0.0
    %988 = vmatprep.subr.mxu0 0.0
    %989 = vmatpush2.msra.mxu0 0.0
    %990 = vmatprep.subr.mxu0 0.0
    %991 = vmatpush2.msra.mxu0 0.0
    %992 = vmatprep.subr.mxu0 0.0
    %993 = vmatpush2.msra.mxu0 0.0
    %994 = vmatprep.subr.mxu0 0.0
    %995 = vmatpush2.msra.mxu0 0.0
    %996 = vmatprep.subr.mxu0 0.0
    %997 = vmatpush2.msra.mxu0 0.0
    %998 = vmatprep.subr.mxu0 0.0
    %999 = vmatpush2.msra.mxu0 0.0
    %1000 = vmatprep.subr.mxu0 0.0
    %1001 = vmatpush2.msra.mxu0 0.0
    %1002 = vmatprep.subr.mxu0 0.0
    %1003 = vmatpush2.msra.mxu0 0.0
    %1004 = vmatprep.subr.mxu0 0.0
    %1005 = vmatpush2.msra.mxu0 0.0
    %1006 = vmatprep.subr.mxu0 0.0
    %1007 = vmatpush2.msra.mxu0 0.0
    %1008 = vmatprep.subr.mxu0 0.0
    %1009 = vmatpush2.msra.mxu0 0.0
    %1010 = vmatprep.subr.mxu0 0.0
    %1011 = vmatpush2.msra.mxu0 0.0
    %1012 = vmatprep.subr.mxu0 0.0
    %1013 = vmatpush2.msra.mxu0 0.0
    %1014 = vmatprep.subr.mxu0 0.0
    %1015 = vmatpush2.msra.mxu0 0.0
    %1016 = vmatprep.subr.mxu0 0.0
    %1017 = vmatpush2.msra.mxu0 0.0
    %1018 = vmatprep.mubr.f32.mxu0 0.0
    %1019 = vmatmul.mubr.f32.gmra.mxu0 %v952
    %v1020 = vpop.f32.mrf.mxu0
    %v1021 = vadd.f32 0.0, %v1020
    %v1022 = vpop.f32.mrf.mxu0
    %1023 = vdwg.mxu0
    %v1024 = vadd.f32 %v950, %v1021
    %v1025 = vxor.u32 %v1024, 2147483648
    %v1026 = vmul.f32 %v1025, 1.442695
    %v1027 = vpow.pop %v1026
    %v1028 = vadd.f32 %v1027, 1.0
    %v1029 = vrcp.pop %v1028
    %v1030 = vmul.f32 1.0, %v1029
    %1032 = vrot.lane.b32.xlu0 %v1024, 32
    %v1033 = vpop.permute.xlu0 %1032
    %v1035 = vmul.f32 %v1030, %v1033
    %1037 = vrot.lane.b32.xlu0 %v1035, 64
    %v1038 = vpop.permute.xlu0 %1037
    %v1040 = vadd.f32 %v1024, %v1038
    %v1041 = vtanh.pop %v1040
    %v1042 = vsub.f32 1.0, %v1030
    %1044 = vrot.lane.b32.xlu0 %v1041, 96
    %v1045 = vpop.permute.xlu0 %1044
    %v1047 = vmul.f32 %v1042, %v1045
    %1048 = vrot.lane.b32.xlu0 %v948, 32
    %v1049 = vpop.permute.xlu0 %1048
    %v1051 = vmul.f32 %v1030, %v1049
    %v1052 = vadd.f32 %v1047, %v1051
    %1054 = vrot.lane.b32.xlu0 %v1052, 96
    %v1055 = vpop.permute.xlu0 %1054
    %1057 = vst.msk [vmem:[#allocation2] sm:$0xff] %vm100, %v1055
    %s1058 = scalar_lea.vmem [#allocation4], 40
    %1059 = vst.msk [vmem:[%s1058] sm:$0xff] %vm100, %v1055
    %v1060 = vld [vmem:[#allocation2] sm:$0xff]
    %s1061 = scalar_lea.vmem [#allocation3], 48
    %v1062 = vld [vmem:[%s1061] sm:$0xff]
    %v1064 = vsel %vm100, %v1060, 0
    %1066 = vmatprep.subr.mxu0 0.0
    %1067 = vmatpush1.msra.mxu0 0.0
    %1068 = vmatprep.subr.mxu0 0.0
    %1069 = vmatpush1.msra.mxu0 0.0
    %1070 = vmatprep.subr.mxu0 0.0
    %1071 = vmatpush1.msra.mxu0 0.0
    %1072 = vmatprep.subr.mxu0 0.0
    %1073 = vmatpush1.msra.mxu0 0.0
    %1074 = vmatprep.subr.mxu0 0.0
    %1075 = vmatpush1.msra.mxu0 0.0
    %1076 = vmatprep.subr.mxu0 0.0
    %1077 = vmatpush1.msra.mxu0 0.0
    %1078 = vmatprep.subr.mxu0 0.0
    %1079 = vmatpush1.msra.mxu0 0.0
    %1080 = vmatprep.subr.mxu0 0.0
    %1081 = vmatpush1.msra.mxu0 0.0
    %1082 = vmatprep.subr.mxu0 0.0
    %1083 = vmatpush1.msra.mxu0 0.0
    %1084 = vmatprep.subr.mxu0 0.0
    %1085 = vmatpush1.msra.mxu0 0.0
    %1086 = vmatprep.subr.mxu0 0.0
    %1087 = vmatpush1.msra.mxu0 0.0
    %1088 = vmatprep.subr.mxu0 0.0
    %1089 = vmatpush1.msra.mxu0 0.0
    %1090 = vmatprep.subr.mxu0 0.0
    %1091 = vmatpush1.msra.mxu0 %v389
    %1092 = vmatprep.subr.mxu0 0.0
    %1093 = vmatpush1.msra.mxu0 %v388
    %1094 = vmatprep.subr.mxu0 0.0
    %1095 = vmatpush1.msra.mxu0 %v387
    %1096 = vmatprep.subr.mxu0 0.0
    %1097 = vmatpush1.msra.mxu0 %v386
    %1098 = vmatprep.subr.mxu0 0.0
    %1099 = vmatpush2.msra.mxu0 0.0
    %1100 = vmatprep.subr.mxu0 0.0
    %1101 = vmatpush2.msra.mxu0 0.0
    %1102 = vmatprep.subr.mxu0 0.0
    %1103 = vmatpush2.msra.mxu0 0.0
    %1104 = vmatprep.subr.mxu0 0.0
    %1105 = vmatpush2.msra.mxu0 0.0
    %1106 = vmatprep.subr.mxu0 0.0
    %1107 = vmatpush2.msra.mxu0 0.0
    %1108 = vmatprep.subr.mxu0 0.0
    %1109 = vmatpush2.msra.mxu0 0.0
    %1110 = vmatprep.subr.mxu0 0.0
    %1111 = vmatpush2.msra.mxu0 0.0
    %1112 = vmatprep.subr.mxu0 0.0
    %1113 = vmatpush2.msra.mxu0 0.0
    %1114 = vmatprep.subr.mxu0 0.0
    %1115 = vmatpush2.msra.mxu0 0.0
    %1116 = vmatprep.subr.mxu0 0.0
    %1117 = vmatpush2.msra.mxu0 0.0
    %1118 = vmatprep.subr.mxu0 0.0
    %1119 = vmatpush2.msra.mxu0 0.0
    %1120 = vmatprep.subr.mxu0 0.0
    %1121 = vmatpush2.msra.mxu0 0.0
    %1122 = vmatprep.subr.mxu0 0.0
    %1123 = vmatpush2.msra.mxu0 0.0
    %1124 = vmatprep.subr.mxu0 0.0
    %1125 = vmatpush2.msra.mxu0 0.0
    %1126 = vmatprep.subr.mxu0 0.0
    %1127 = vmatpush2.msra.mxu0 0.0
    %1128 = vmatprep.subr.mxu0 0.0
    %1129 = vmatpush2.msra.mxu0 0.0
    %1130 = vmatprep.mubr.f32.mxu0 0.0
    %1131 = vmatmul.mubr.f32.gmra.mxu0 %v1064
    %v1132 = vpop.f32.mrf.mxu0
    %v1133 = vadd.f32 0.0, %v1132
    %v1134 = vpop.f32.mrf.mxu0
    %1135 = vdwg.mxu0
    %v1136 = vadd.f32 %v1062, %v1133
    %v1137 = vxor.u32 %v1136, 2147483648
    %v1138 = vmul.f32 %v1137, 1.442695
    %v1139 = vpow.pop %v1138
    %v1140 = vadd.f32 %v1139, 1.0
    %v1141 = vrcp.pop %v1140
    %v1142 = vmul.f32 1.0, %v1141
    %1144 = vrot.lane.b32.xlu0 %v1136, 32
    %v1145 = vpop.permute.xlu0 %1144
    %v1147 = vmul.f32 %v1142, %v1145
    %1149 = vrot.lane.b32.xlu0 %v1147, 64
    %v1150 = vpop.permute.xlu0 %1149
    %v1152 = vadd.f32 %v1136, %v1150
    %v1153 = vtanh.pop %v1152
    %v1154 = vsub.f32 1.0, %v1142
    %1156 = vrot.lane.b32.xlu0 %v1153, 96
    %v1157 = vpop.permute.xlu0 %1156
    %v1159 = vmul.f32 %v1154, %v1157
    %1160 = vrot.lane.b32.xlu0 %v1060, 32
    %v1161 = vpop.permute.xlu0 %1160
    %v1163 = vmul.f32 %v1142, %v1161
    %v1164 = vadd.f32 %v1159, %v1163
    %1166 = vrot.lane.b32.xlu0 %v1164, 96
    %v1167 = vpop.permute.xlu0 %1166
    %1169 = vst.msk [vmem:[#allocation2] sm:$0xff] %vm100, %v1167
    %s1170 = scalar_lea.vmem [#allocation4], 48
    %1171 = vst.msk [vmem:[%s1170] sm:$0xff] %vm100, %v1167
    %v1172 = vld [vmem:[#allocation2] sm:$0xff]
    %s1173 = scalar_lea.vmem [#allocation3], 56
    %v1174 = vld [vmem:[%s1173] sm:$0xff]
    %v1176 = vsel %vm100, %v1172, 0
    %1178 = vmatprep.subr.mxu0 0.0
    %1179 = vmatpush1.msra.mxu0 0.0
    %1180 = vmatprep.subr.mxu0 0.0
    %1181 = vmatpush1.msra.mxu0 0.0
    %1182 = vmatprep.subr.mxu0 0.0
    %1183 = vmatpush1.msra.mxu0 0.0
    %1184 = vmatprep.subr.mxu0 0.0
    %1185 = vmatpush1.msra.mxu0 0.0
    %1186 = vmatprep.subr.mxu0 0.0
    %1187 = vmatpush1.msra.mxu0 0.0
    %1188 = vmatprep.subr.mxu0 0.0
    %1189 = vmatpush1.msra.mxu0 0.0
    %1190 = vmatprep.subr.mxu0 0.0
    %1191 = vmatpush1.msra.mxu0 0.0
    %1192 = vmatprep.subr.mxu0 0.0
    %1193 = vmatpush1.msra.mxu0 0.0
    %1194 = vmatprep.subr.mxu0 0.0
    %1195 = vmatpush1.msra.mxu0 0.0
    %1196 = vmatprep.subr.mxu0 0.0
    %1197 = vmatpush1.msra.mxu0 0.0
    %1198 = vmatprep.subr.mxu0 0.0
    %1199 = vmatpush1.msra.mxu0 0.0
    %1200 = vmatprep.subr.mxu0 0.0
    %1201 = vmatpush1.msra.mxu0 0.0
    %1202 = vmatprep.subr.mxu0 0.0
    %1203 = vmatpush1.msra.mxu0 %v389
    %1204 = vmatprep.subr.mxu0 0.0
    %1205 = vmatpush1.msra.mxu0 %v388
    %1206 = vmatprep.subr.mxu0 0.0
    %1207 = vmatpush1.msra.mxu0 %v387
    %1208 = vmatprep.subr.mxu0 0.0
    %1209 = vmatpush1.msra.mxu0 %v386
    %1210 = vmatprep.subr.mxu0 0.0
    %1211 = vmatpush2.msra.mxu0 0.0
    %1212 = vmatprep.subr.mxu0 0.0
    %1213 = vmatpush2.msra.mxu0 0.0
    %1214 = vmatprep.subr.mxu0 0.0
    %1215 = vmatpush2.msra.mxu0 0.0
    %1216 = vmatprep.subr.mxu0 0.0
    %1217 = vmatpush2.msra.mxu0 0.0
    %1218 = vmatprep.subr.mxu0 0.0
    %1219 = vmatpush2.msra.mxu0 0.0
    %1220 = vmatprep.subr.mxu0 0.0
    %1221 = vmatpush2.msra.mxu0 0.0
    %1222 = vmatprep.subr.mxu0 0.0
    %1223 = vmatpush2.msra.mxu0 0.0
    %1224 = vmatprep.subr.mxu0 0.0
    %1225 = vmatpush2.msra.mxu0 0.0
    %1226 = vmatprep.subr.mxu0 0.0
    %1227 = vmatpush2.msra.mxu0 0.0
    %1228 = vmatprep.subr.mxu0 0.0
    %1229 = vmatpush2.msra.mxu0 0.0
    %1230 = vmatprep.subr.mxu0 0.0
    %1231 = vmatpush2.msra.mxu0 0.0
    %1232 = vmatprep.subr.mxu0 0.0
    %1233 = vmatpush2.msra.mxu0 0.0
    %1234 = vmatprep.subr.mxu0 0.0
    %1235 = vmatpush2.msra.mxu0 0.0
    %1236 = vmatprep.subr.mxu0 0.0
    %1237 = vmatpush2.msra.mxu0 0.0
    %1238 = vmatprep.subr.mxu0 0.0
    %1239 = vmatpush2.msra.mxu0 0.0
    %1240 = vmatprep.subr.mxu0 0.0
    %1241 = vmatpush2.msra.mxu0 0.0
    %1242 = vmatprep.mubr.f32.mxu0 0.0
    %1243 = vmatmul.mubr.f32.gmra.mxu0 %v1176
    %v1244 = vpop.f32.mrf.mxu0
    %v1245 = vadd.f32 0.0, %v1244
    %v1246 = vpop.f32.mrf.mxu0
    %1247 = vdwg.mxu0
    %v1248 = vadd.f32 %v1174, %v1245
    %v1249 = vxor.u32 %v1248, 2147483648
    %v1250 = vmul.f32 %v1249, 1.442695
    %v1251 = vpow.pop %v1250
    %v1252 = vadd.f32 %v1251, 1.0
    %v1253 = vrcp.pop %v1252
    %v1254 = vmul.f32 1.0, %v1253
    %1256 = vrot.lane.b32.xlu0 %v1248, 32
    %v1257 = vpop.permute.xlu0 %1256
    %v1259 = vmul.f32 %v1254, %v1257
    %1261 = vrot.lane.b32.xlu0 %v1259, 64
    %v1262 = vpop.permute.xlu0 %1261
    %v1264 = vadd.f32 %v1248, %v1262
    %v1265 = vtanh.pop %v1264
    %v1266 = vsub.f32 1.0, %v1254
    %1268 = vrot.lane.b32.xlu0 %v1265, 96
    %v1269 = vpop.permute.xlu0 %1268
    %v1271 = vmul.f32 %v1266, %v1269
    %1272 = vrot.lane.b32.xlu0 %v1172, 32
    %v1273 = vpop.permute.xlu0 %1272
    %v1275 = vmul.f32 %v1254, %v1273
    %v1276 = vadd.f32 %v1271, %v1275
    %1278 = vrot.lane.b32.xlu0 %v1276, 96
    %v1279 = vpop.permute.xlu0 %1278
    %1281 = vst.msk [vmem:[#allocation2] sm:$0xff] %vm100, %v1279
    %s1282 = scalar_lea.vmem [#allocation4], 56
    %1283 = vst.msk [vmem:[%s1282] sm:$0xff] %vm100, %v1279
    %v1284 = vld [vmem:[#allocation4] sm:$0xff]
    %v1285 = vld [vmem:[#allocation4 + $0x8] sm:$0xff]
    %v1286 = vld [vmem:[#allocation4 + $0x10] sm:$0xff]
    %v1287 = vld [vmem:[#allocation4 + $0x18] sm:$0xff]
    %v1288 = vld [vmem:[#allocation4 + $0x20] sm:$0xff]
    %v1289 = vld [vmem:[#allocation4 + $0x28] sm:$0xff]
    %v1290 = vld [vmem:[#allocation4 + $0x30] sm:$0xff]
    %v1291 = vld [vmem:[#allocation4 + $0x38] sm:$0xff]
    %v1292 = vld [vmem:[%s5] sm:$0xff]
    %v1293 = vld [vmem:[%s5 + $0x8] sm:$0xff]
    %v1294 = vld [vmem:[%s5 + $0x10] sm:$0xff]
    %v1295 = vld [vmem:[%s5 + $0x18] sm:$0xff]
    %v1296 = vld [vmem:[%s8] sm:$0x1]
    %v1298 = vlaneseq
    %v1299 = vshrl.u32 %v1298, 7
    %v1300 = vsub.s32 0, %v1299
    %v1301 = vrot.slane %v1296, %v1300
    %v1304 = vsel %vm100, %v1284, 0
    %v1307 = vsel %vm100, %v1285, 0
    %v1310 = vsel %vm100, %v1286, 0
    %v1313 = vsel %vm100, %v1287, 0
    %v1316 = vsel %vm100, %v1288, 0
    %v1319 = vsel %vm100, %v1289, 0
    %v1322 = vsel %vm100, %v1290, 0
    %v1325 = vsel %vm100, %v1291, 0
    %1327 = vmatprep.subr.mxu0 0.0
    %1328 = vmatpush1.msra.mxu0 0.0
    %1329 = vmatprep.subr.mxu0 0.0
    %1330 = vmatpush1.msra.mxu0 0.0
    %1331 = vmatprep.subr.mxu0 0.0
    %1332 = vmatpush1.msra.mxu0 0.0
    %1333 = vmatprep.subr.mxu0 0.0
    %1334 = vmatpush1.msra.mxu0 0.0
    %1335 = vmatprep.subr.mxu0 0.0
    %1336 = vmatpush1.msra.mxu0 0.0
    %1337 = vmatprep.subr.mxu0 0.0
    %1338 = vmatpush1.msra.mxu0 0.0
    %1339 = vmatprep.subr.mxu0 0.0
    %1340 = vmatpush1.msra.mxu0 0.0
    %1341 = vmatprep.subr.mxu0 0.0
    %1342 = vmatpush1.msra.mxu0 0.0
    %1343 = vmatprep.subr.mxu0 0.0
    %1344 = vmatpush1.msra.mxu0 0.0
    %1345 = vmatprep.subr.mxu0 0.0
    %1346 = vmatpush1.msra.mxu0 0.0
    %1347 = vmatprep.subr.mxu0 0.0
    %1348 = vmatpush1.msra.mxu0 0.0
    %1349 = vmatprep.subr.mxu0 0.0
    %1350 = vmatpush1.msra.mxu0 0.0
    %1351 = vmatprep.subr.mxu0 0.0
    %1352 = vmatpush1.msra.mxu0 %v1295
    %1353 = vmatprep.subr.mxu0 0.0
    %1354 = vmatpush1.msra.mxu0 %v1294
    %1355 = vmatprep.subr.mxu0 0.0
    %1356 = vmatpush1.msra.mxu0 %v1293
    %1357 = vmatprep.subr.mxu0 0.0
    %1358 = vmatpush1.msra.mxu0 %v1292
    %1359 = vmatprep.subr.mxu0 0.0
    %1360 = vmatpush2.msra.mxu0 0.0
    %1361 = vmatprep.subr.mxu0 0.0
    %1362 = vmatpush2.msra.mxu0 0.0
    %1363 = vmatprep.subr.mxu0 0.0
    %1364 = vmatpush2.msra.mxu0 0.0
    %1365 = vmatprep.subr.mxu0 0.0
    %1366 = vmatpush2.msra.mxu0 0.0
    %1367 = vmatprep.subr.mxu0 0.0
    %1368 = vmatpush2.msra.mxu0 0.0
    %1369 = vmatprep.subr.mxu0 0.0
    %1370 = vmatpush2.msra.mxu0 0.0
    %1371 = vmatprep.subr.mxu0 0.0
    %1372 = vmatpush2.msra.mxu0 0.0
    %1373 = vmatprep.subr.mxu0 0.0
    %1374 = vmatpush2.msra.mxu0 0.0
    %1375 = vmatprep.subr.mxu0 0.0
    %1376 = vmatpush2.msra.mxu0 0.0
    %1377 = vmatprep.subr.mxu0 0.0
    %1378 = vmatpush2.msra.mxu0 0.0
    %1379 = vmatprep.subr.mxu0 0.0
    %1380 = vmatpush2.msra.mxu0 0.0
    %1381 = vmatprep.subr.mxu0 0.0
    %1382 = vmatpush2.msra.mxu0 0.0
    %1383 = vmatprep.subr.mxu0 0.0
    %1384 = vmatpush2.msra.mxu0 0.0
    %1385 = vmatprep.subr.mxu0 0.0
    %1386 = vmatpush2.msra.mxu0 0.0
    %1387 = vmatprep.subr.mxu0 0.0
    %1388 = vmatpush2.msra.mxu0 0.0
    %1389 = vmatprep.subr.mxu0 0.0
    %1390 = vmatpush2.msra.mxu0 0.0
    %1391 = vmatprep.mubr.f32.mxu0 0.0
    %1392 = vmatmul.mubr.f32.gmra.mxu0 %v1304
    %v1393 = vpop.f32.mrf.mxu0
    %v1394 = vadd.f32 %v1301, %v1393
    %v1395 = vpop.f32.mrf.mxu0
    %1396 = vmatprep.mubr.f32.mxu0 0.0
    %1397 = vmatmul.mubr.f32.gmra.mxu0 %v1307
    %v1398 = vpop.f32.mrf.mxu0
    %v1399 = vadd.f32 %v1301, %v1398
    %v1400 = vpop.f32.mrf.mxu0
    %1401 = vmatprep.mubr.f32.mxu0 0.0
    %1402 = vmatmul.mubr.f32.gmra.mxu0 %v1310
    %v1403 = vpop.f32.mrf.mxu0
    %v1404 = vadd.f32 %v1301, %v1403
    %v1405 = vpop.f32.mrf.mxu0
    %1406 = vmatprep.mubr.f32.mxu0 0.0
    %1407 = vmatmul.mubr.f32.gmra.mxu0 %v1313
    %v1408 = vpop.f32.mrf.mxu0
    %v1409 = vadd.f32 %v1301, %v1408
    %v1410 = vpop.f32.mrf.mxu0
    %1411 = vmatprep.mubr.f32.mxu0 0.0
    %1412 = vmatmul.mubr.f32.gmra.mxu0 %v1316
    %v1413 = vpop.f32.mrf.mxu0
    %v1414 = vadd.f32 %v1301, %v1413
    %v1415 = vpop.f32.mrf.mxu0
    %1416 = vmatprep.mubr.f32.mxu0 0.0
    %1417 = vmatmul.mubr.f32.gmra.mxu0 %v1319
    %v1418 = vpop.f32.mrf.mxu0
    %v1419 = vadd.f32 %v1301, %v1418
    %v1420 = vpop.f32.mrf.mxu0
    %1421 = vmatprep.mubr.f32.mxu0 0.0
    %1422 = vmatmul.mubr.f32.gmra.mxu0 %v1322
    %v1423 = vpop.f32.mrf.mxu0
    %v1424 = vadd.f32 %v1301, %v1423
    %v1425 = vpop.f32.mrf.mxu0
    %1426 = vmatprep.mubr.f32.mxu0 0.0
    %1427 = vmatmul.mubr.f32.gmra.mxu0 %v1325
    %v1428 = vpop.f32.mrf.mxu0
    %v1429 = vadd.f32 %v1301, %v1428
    %v1430 = vpop.f32.mrf.mxu0
    %1431 = vdwg.mxu0
    %1432 = vrot.lane.b32.xlu0 %v1284, 16
    %v1433 = vpop.permute.xlu0 %1432
    %1434 = vrot.lane.b32.xlu0 %v1285, 16
    %v1435 = vpop.permute.xlu0 %1434
    %1436 = vrot.lane.b32.xlu0 %v1286, 16
    %v1437 = vpop.permute.xlu0 %1436
    %1438 = vrot.lane.b32.xlu0 %v1287, 16
    %v1439 = vpop.permute.xlu0 %1438
    %1440 = vrot.lane.b32.xlu0 %v1288, 16
    %v1441 = vpop.permute.xlu0 %1440
    %1442 = vrot.lane.b32.xlu0 %v1289, 16
    %v1443 = vpop.permute.xlu0 %1442
    %1444 = vrot.lane.b32.xlu0 %v1290, 16
    %v1445 = vpop.permute.xlu0 %1444
    %1446 = vrot.lane.b32.xlu0 %v1291, 16
    %v1447 = vpop.permute.xlu0 %1446
    %vm1456 = vcmask 130048
    %v1457 = vsel %vm1456, %v1394, %v1433
    %v1458 = vsel %vm1456, %v1399, %v1435
    %v1459 = vsel %vm1456, %v1404, %v1437
    %v1460 = vsel %vm1456, %v1409, %v1439
    %v1461 = vsel %vm1456, %v1414, %v1441
    %v1462 = vsel %vm1456, %v1419, %v1443
    %v1463 = vsel %vm1456, %v1424, %v1445
    %v1464 = vsel %vm1456, %v1429, %v1447
    %vm1465 = vcmask 392192
    %v1466 = vsel %vm1465, %v1457, 0.0
    %v1467 = vsel %vm1465, %v1458, 0.0
    %v1468 = vsel %vm1465, %v1459, 0.0
    %v1469 = vsel %vm1465, %v1460, 0.0
    %v1470 = vsel %vm1465, %v1461, 0.0
    %v1471 = vsel %vm1465, %v1462, 0.0
    %v1472 = vsel %vm1465, %v1463, 0.0
    %v1473 = vsel %vm1465, %v1464, 0.0
    %1474 = vst [vmem:[#allocation11] sm:$0xff] %v1466
    %1475 = vst [vmem:[#allocation11 + $0x8] sm:$0xff] %v1467
    %1476 = vst [vmem:[#allocation11 + $0x10] sm:$0xff] %v1468
    %1477 = vst [vmem:[#allocation11 + $0x18] sm:$0xff] %v1469
    %1478 = vst [vmem:[#allocation11 + $0x20] sm:$0xff] %v1470
    %1479 = vst [vmem:[#allocation11 + $0x28] sm:$0xff] %v1471
    %1480 = vst [vmem:[#allocation11 + $0x30] sm:$0xff] %v1472
    %1481 = vst [vmem:[#allocation11 + $0x38] sm:$0xff] %v1473
    // Predicated region
    $region54: #{tpu_custom_call.1} parent=1 // pred_check
      _
    $region55: #{tpu_custom_call.1} parent=1 // pred_check_branch
      %1483 = sbr.rel (0) target = $region57
    $region56: #{tpu_custom_call.1} parent=1 // pred_region
      %s1485 = ssub.s32 1024, 1024
      %1486 = vsyncadd [#allocation7], %s1485
      %s1487 = sshll.u32 [#allocation11], 4
      %s1488 = int_to_ptr.vmem [resolvable:$true] %s1487
      %1493 = dma.vmem_to_hbm [thread:$0]  %s1488, 1024, %s9, [#allocation7], 128, 128, 8
    $region57: #{tpu_custom_call.1} parent=1 // pred_fallthru
      _
    // Predicated region
    $region58: #{tpu_custom_call.1} parent=1 // pred_check
      _
    $region59: #{tpu_custom_call.1} parent=1 // pred_check_branch
      %1495 = sbr.rel (0) target = $region61
    $region60: #{tpu_custom_call.1} parent=1 // pred_region
      %1496 = dma.done [#allocation7], 1024
    $region61: #{tpu_custom_call.1} parent=1 // pred_fallthru
      _
    %1497 = vsyncpa [#allocation6], 1
    %1498 = vsyncpa [#allocation9], 1
    %1499 = vsyncpa [#allocation7], 1

</llo_original>
